<compile_context>
chip_gen: v7x
topology: tpu7x:2x2x1
jax: 0.10.0
libtpu: 0.0.40
codegen_flags: <defaults>
</compile_context>

<pallas_src>
import jax
import jax.numpy as jnp
from jax.experimental import pallas as pl
from jax.experimental.pallas import tpu as pltpu

# Problem sizes (small, consistent with the module's forward).
BATCH = 256          # batch; tiled over the grid in tm-row blocks
INPUT_SIZE = 32
UNITS = 16
NUM_EXPERTS = 4
NUM_TASKS = 2

EU = NUM_EXPERTS * UNITS          # expert-output columns in the fused matmul
TE = NUM_TASKS * NUM_EXPERTS      # gate-logit columns in the fused matmul
W_PAD = 128                       # fused weight columns padded to lane width
OUT_PAD = 128                     # output columns padded to lane width
assert EU + TE <= W_PAD and NUM_TASKS * UNITS <= OUT_PAD


def mmoe_kernel(x_ref, w_ref, out_ref):
    # x_ref:   (tm, I)        input rows for this grid step (f32 or bf16)
    # w_ref:   (I, W_PAD)     fused [expert | gate | zero-pad] weight slab (VMEM-resident)
    # out_ref: (tm, OUT_PAD)  f32, lane-dense, written with a single store
    x = x_ref[...]
    tm = x.shape[0]

    # One MXU matmul for everything: all experts and all task gates.
    fused = jnp.dot(x, w_ref[...], preferred_element_type=jnp.float32)  # (tm, W_PAD) f32

    task_outs = []
    for t in range(NUM_TASKS):
        lo = EU + t * NUM_EXPERTS
        logits = fused[:, lo:lo + NUM_EXPERTS]                # (tm, E) static slice
        m = jnp.max(logits, axis=-1, keepdims=True)
        p = jnp.exp(logits - m)
        denom = jnp.sum(p, axis=-1, keepdims=True)
        gate = p / denom                                      # exact softmax (no approx recip)

        # Gate-weighted combine, unrolled over experts on the (tm, E*U) lane
        # layout — no (B, E, U) reshape / cross-tile relayout.
        acc = jnp.zeros((tm, UNITS), jnp.float32)
        for e in range(NUM_EXPERTS):
            acc = acc + fused[:, e * UNITS:(e + 1) * UNITS] * gate[:, e:e + 1]
        task_outs.append(acc)

    pad_cols = OUT_PAD - NUM_TASKS * UNITS
    if pad_cols:
        task_outs.append(jnp.zeros((tm, pad_cols), jnp.float32))
    # Single lane-dense store of both task outputs (+ zero lane padding).
    out_ref[...] = jnp.concatenate(task_outs, axis=-1).astype(out_ref.dtype)


def prepare_mmoe_weights(expert_kernels, gate_kernels, dtype=jnp.float32):
    """One-time relayout / pad / cast (hoisted out of the hot forward path).

    expert_kernels: (I, U, E); gate_kernels: (T, I, E)
    Returns fused slab (I, W_PAD): expert columns expert-major (col = e*U + u),
    then gate columns task-major (col = EU + t*E + e), then zero padding to a
    128-lane-dense width. Use dtype=jnp.bfloat16 on v6e/v7x for half the DMA
    bytes / VMEM footprint (accumulation stays f32 inside the kernel)."""
    ew2d = jnp.transpose(expert_kernels, (0, 2, 1)).reshape(INPUT_SIZE, EU)
    gw2d = jnp.transpose(gate_kernels, (1, 0, 2)).reshape(INPUT_SIZE, TE)
    slab = jnp.concatenate([ew2d, gw2d], axis=1)
    pad = W_PAD - (EU + TE)
    if pad:
        slab = jnp.concatenate(
            [slab, jnp.zeros((INPUT_SIZE, pad), slab.dtype)], axis=1)
    return slab.astype(dtype)


def mmoe_forward(x, fused_w, *, tm=128):
    """x: (B, I); fused_w: (I, W_PAD) from prepare_mmoe_weights.
    Returns a list of num_tasks arrays of shape (B, U), float32."""
    B, I = x.shape
    tm = min(tm, B)
    assert B % tm == 0, "batch must be divisible by the row tile"
    x = x.astype(fused_w.dtype)          # compute dtype follows the weight slab

    out2d = pl.pallas_call(
        mmoe_kernel,
        out_shape=jax.ShapeDtypeStruct((B, OUT_PAD), jnp.float32),
        grid=(B // tm,),
        in_specs=[
            # x: tiled over the batch, double-buffered by the pipeliner.
            pl.BlockSpec((tm, I), lambda i: (i, 0)),
            # Weights: constant block index -> stays VMEM-resident across steps.
            pl.BlockSpec((I, W_PAD), lambda i: (0, 0)),
        ],
        out_specs=pl.BlockSpec((tm, OUT_PAD), lambda i: (i, 0)),
        compiler_params=pltpu.CompilerParams(
            # Batch rows are independent -> shard across TCs on v7x megacore.
            dimension_semantics=("parallel",)),
    )(x, fused_w)

    return [out2d[:, t * UNITS:(t + 1) * UNITS] for t in range(NUM_TASKS)]


def mmoe_reference(x, expert_kernels, gate_kernels):
    """Pure-JAX reference mirroring the PyTorch forward."""
    expert_outputs = jnp.einsum('ab,bcd->acd', x, expert_kernels)  # (B, U, E)
    outs = []
    for t in range(NUM_TASKS):
        gate = jax.nn.softmax(jnp.einsum('ab,bc->ac', x, gate_kernels[t]), axis=-1)
        weighted = expert_outputs * gate[:, None, :]
        outs.append(jnp.sum(weighted, axis=2))
    return outs


if __name__ == "__main__":
    key = jax.random.PRNGKey(0)
    k_x, k_ew, k_gw = jax.random.split(key, 3)

    # Deterministic "randn"-style parameter init (shapes from __init__).
    x = jax.random.normal(k_x, (BATCH, INPUT_SIZE), dtype=jnp.float32)
    expert_kernels = jax.random.normal(
        k_ew, (INPUT_SIZE, UNITS, NUM_EXPERTS), dtype=jnp.float32)
    gate_kernels = jax.random.normal(
        k_gw, (NUM_TASKS, INPUT_SIZE, NUM_EXPERTS), dtype=jnp.float32)
    # TODO(synk): expert/gate bias and expert_activation paths are disabled by
    # default in the module (use_expert_bias=False, use_gate_bias=False,
    # expert_activation=None) and are not implemented here.

    refs = mmoe_reference(x, expert_kernels, gate_kernels)

    # --- f32 path: exact softmax, tight tolerance. ---
    w_f32 = jax.block_until_ready(
        prepare_mmoe_weights(expert_kernels, gate_kernels, jnp.float32))
    outs = mmoe_forward(x, w_f32)
    outs = [jax.block_until_ready(o) for o in outs]
    for o, r in zip(outs, refs):
        assert o.shape == (BATCH, UNITS)
        assert jnp.allclose(o, r, atol=1e-4, rtol=1e-4), "f32 mismatch vs reference"

    # --- bf16 path (v6e/v7x perf configuration): compared against a reference
    # fed the same bf16-quantized inputs, so the check isolates kernel math
    # (f32 accumulate) from the intentional bf16 input quantization. ---
    w_bf16 = jax.block_until_ready(
        prepare_mmoe_weights(expert_kernels, gate_kernels, jnp.bfloat16))
    outs_bf = mmoe_forward(x, w_bf16)
    outs_bf = [jax.block_until_ready(o) for o in outs_bf]
    refs_bf = mmoe_reference(
        x.astype(jnp.bfloat16).astype(jnp.float32),
        expert_kernels.astype(jnp.bfloat16).astype(jnp.float32),
        gate_kernels.astype(jnp.bfloat16).astype(jnp.float32))
    for o, r in zip(outs_bf, refs_bf):
        assert o.shape == (BATCH, UNITS)
        assert jnp.allclose(o, r, atol=2e-2, rtol=2e-2), "bf16 mismatch vs reference"

    print("KERNEL_OK")
</pallas_src>

<mosaic_0001>
module attributes {stable_mosaic.version = 11 : i64} {
  func.func @mmoe_kernel(%arg0: i32, %arg1: memref<128x32xf32, #tpu.memory_space<vmem>>, %arg2: memref<32x128xf32, #tpu.memory_space<vmem>>, %arg3: memref<128x128xf32, #tpu.memory_space<vmem>>) attributes {dimension_semantics = [#tpu.dimension_semantics<parallel>], iteration_bounds = array<i64: 2>, scalar_prefetch = 0 : i64, scratch_operands = 0 : i64, tpu.core_type = #tpu.core_type<tc>, window_params = [{transform_indices = @transform_0, window_bounds = array<i64: 128, 32>}, {pipeline_mode = #tpu.pipeline_mode<synchronous>, transform_indices = @transform_1, window_bounds = array<i64: 32, 128>}, {transform_indices = @transform_2, window_bounds = array<i64: 128, 128>}]} {
    %c0 = arith.constant 0 : index
    %c0_0 = arith.constant 0 : index
    %0 = vector.load %arg1[%c0, %c0_0] : memref<128x32xf32, #tpu.memory_space<vmem>>, vector<128x32xf32>
    %c0_1 = arith.constant 0 : index
    %c0_2 = arith.constant 0 : index
    %1 = vector.load %arg2[%c0_1, %c0_2] : memref<32x128xf32, #tpu.memory_space<vmem>>, vector<32x128xf32>
    %cst = arith.constant dense<0.000000e+00> : vector<128x128xf32>
    %2 = tpu.matmul %0, %1, %cst {dimension_numbers = #tpu.dot_dimension_numbers<[1], [0], [0], [1], [0, 0, 1, 1], [], []>} : vector<128x32xf32>, vector<32x128xf32>, vector<128x128xf32> -> vector<128x128xf32>
    %3 = vector.extract_strided_slice %2 {offsets = [0, 64], sizes = [128, 4], strides = [1, 1]} : vector<128x128xf32> to vector<128x4xf32>
    %cst_3 = arith.constant dense<0xFF800000> : vector<128xf32>
    %4 = vector.multi_reduction <maximumf>, %3, %cst_3 [1] : vector<128x4xf32> to vector<128xf32>
    %5 = vector.shape_cast %4 : vector<128xf32> to vector<128x1xf32>
    %6 = vector.broadcast %5 : vector<128x1xf32> to vector<128x4xf32>
    %7 = arith.subf %3, %6 : vector<128x4xf32>
    %8 = math.exp %7 : vector<128x4xf32>
    %cst_4 = arith.constant dense<0.000000e+00> : vector<128xf32>
    %9 = vector.multi_reduction <add>, %8, %cst_4 [1] : vector<128x4xf32> to vector<128xf32>
    %10 = vector.shape_cast %9 : vector<128xf32> to vector<128x1xf32>
    %11 = vector.broadcast %10 : vector<128x1xf32> to vector<128x4xf32>
    %12 = arith.divf %8, %11 : vector<128x4xf32>
    %cst_5 = arith.constant 0.000000e+00 : f32
    %13 = vector.broadcast %cst_5 : f32 to vector<128x16xf32>
    %14 = vector.extract_strided_slice %2 {offsets = [0, 0], sizes = [128, 16], strides = [1, 1]} : vector<128x128xf32> to vector<128x16xf32>
    %15 = vector.extract_strided_slice %12 {offsets = [0, 0], sizes = [128, 1], strides = [1, 1]} : vector<128x4xf32> to vector<128x1xf32>
    %16 = vector.broadcast %15 : vector<128x1xf32> to vector<128x16xf32>
    %17 = arith.mulf %14, %16 : vector<128x16xf32>
    %18 = arith.addf %13, %17 : vector<128x16xf32>
    %19 = vector.extract_strided_slice %2 {offsets = [0, 16], sizes = [128, 16], strides = [1, 1]} : vector<128x128xf32> to vector<128x16xf32>
    %20 = vector.extract_strided_slice %12 {offsets = [0, 1], sizes = [128, 1], strides = [1, 1]} : vector<128x4xf32> to vector<128x1xf32>
    %21 = vector.broadcast %20 : vector<128x1xf32> to vector<128x16xf32>
    %22 = arith.mulf %19, %21 : vector<128x16xf32>
    %23 = arith.addf %18, %22 : vector<128x16xf32>
    %24 = vector.extract_strided_slice %2 {offsets = [0, 32], sizes = [128, 16], strides = [1, 1]} : vector<128x128xf32> to vector<128x16xf32>
    %25 = vector.extract_strided_slice %12 {offsets = [0, 2], sizes = [128, 1], strides = [1, 1]} : vector<128x4xf32> to vector<128x1xf32>
    %26 = vector.broadcast %25 : vector<128x1xf32> to vector<128x16xf32>
    %27 = arith.mulf %24, %26 : vector<128x16xf32>
    %28 = arith.addf %23, %27 : vector<128x16xf32>
    %29 = vector.extract_strided_slice %2 {offsets = [0, 48], sizes = [128, 16], strides = [1, 1]} : vector<128x128xf32> to vector<128x16xf32>
    %30 = vector.extract_strided_slice %12 {offsets = [0, 3], sizes = [128, 1], strides = [1, 1]} : vector<128x4xf32> to vector<128x1xf32>
    %31 = vector.broadcast %30 : vector<128x1xf32> to vector<128x16xf32>
    %32 = arith.mulf %29, %31 : vector<128x16xf32>
    %33 = arith.addf %28, %32 : vector<128x16xf32>
    %34 = vector.extract_strided_slice %2 {offsets = [0, 68], sizes = [128, 4], strides = [1, 1]} : vector<128x128xf32> to vector<128x4xf32>
    %cst_6 = arith.constant dense<0xFF800000> : vector<128xf32>
    %35 = vector.multi_reduction <maximumf>, %34, %cst_6 [1] : vector<128x4xf32> to vector<128xf32>
    %36 = vector.shape_cast %35 : vector<128xf32> to vector<128x1xf32>
    %37 = vector.broadcast %36 : vector<128x1xf32> to vector<128x4xf32>
    %38 = arith.subf %34, %37 : vector<128x4xf32>
    %39 = math.exp %38 : vector<128x4xf32>
    %cst_7 = arith.constant dense<0.000000e+00> : vector<128xf32>
    %40 = vector.multi_reduction <add>, %39, %cst_7 [1] : vector<128x4xf32> to vector<128xf32>
    %41 = vector.shape_cast %40 : vector<128xf32> to vector<128x1xf32>
    %42 = vector.broadcast %41 : vector<128x1xf32> to vector<128x4xf32>
    %43 = arith.divf %39, %42 : vector<128x4xf32>
    %cst_8 = arith.constant 0.000000e+00 : f32
    %44 = vector.broadcast %cst_8 : f32 to vector<128x16xf32>
    %45 = vector.extract_strided_slice %2 {offsets = [0, 0], sizes = [128, 16], strides = [1, 1]} : vector<128x128xf32> to vector<128x16xf32>
    %46 = vector.extract_strided_slice %43 {offsets = [0, 0], sizes = [128, 1], strides = [1, 1]} : vector<128x4xf32> to vector<128x1xf32>
    %47 = vector.broadcast %46 : vector<128x1xf32> to vector<128x16xf32>
    %48 = arith.mulf %45, %47 : vector<128x16xf32>
    %49 = arith.addf %44, %48 : vector<128x16xf32>
    %50 = vector.extract_strided_slice %2 {offsets = [0, 16], sizes = [128, 16], strides = [1, 1]} : vector<128x128xf32> to vector<128x16xf32>
    %51 = vector.extract_strided_slice %43 {offsets = [0, 1], sizes = [128, 1], strides = [1, 1]} : vector<128x4xf32> to vector<128x1xf32>
    %52 = vector.broadcast %51 : vector<128x1xf32> to vector<128x16xf32>
    %53 = arith.mulf %50, %52 : vector<128x16xf32>
    %54 = arith.addf %49, %53 : vector<128x16xf32>
    %55 = vector.extract_strided_slice %2 {offsets = [0, 32], sizes = [128, 16], strides = [1, 1]} : vector<128x128xf32> to vector<128x16xf32>
    %56 = vector.extract_strided_slice %43 {offsets = [0, 2], sizes = [128, 1], strides = [1, 1]} : vector<128x4xf32> to vector<128x1xf32>
    %57 = vector.broadcast %56 : vector<128x1xf32> to vector<128x16xf32>
    %58 = arith.mulf %55, %57 : vector<128x16xf32>
    %59 = arith.addf %54, %58 : vector<128x16xf32>
    %60 = vector.extract_strided_slice %2 {offsets = [0, 48], sizes = [128, 16], strides = [1, 1]} : vector<128x128xf32> to vector<128x16xf32>
    %61 = vector.extract_strided_slice %43 {offsets = [0, 3], sizes = [128, 1], strides = [1, 1]} : vector<128x4xf32> to vector<128x1xf32>
    %62 = vector.broadcast %61 : vector<128x1xf32> to vector<128x16xf32>
    %63 = arith.mulf %60, %62 : vector<128x16xf32>
    %64 = arith.addf %59, %63 : vector<128x16xf32>
    %cst_9 = arith.constant 0.000000e+00 : f32
    %65 = vector.broadcast %cst_9 : f32 to vector<128x96xf32>
    %66 = tpu.concatenate %33, %64, %65 in 1 : vector<128x16xf32>, vector<128x16xf32>, vector<128x96xf32> -> vector<128x128xf32>
    %c0_10 = arith.constant 0 : index
    %c0_11 = arith.constant 0 : index
    %67 = vector.load %arg3[%c0_10, %c0_11] : memref<128x128xf32, #tpu.memory_space<vmem>>, vector<128x128xf32>
    tpu.vector_store %arg3[%c0_10, %c0_11], %66 {strides = array<i32>} : memref<128x128xf32, #tpu.memory_space<vmem>>, vector<128x128xf32>,
    return
  }
  func.func @transform_0(%arg0: i32) -> (i32, i32) {
    %c0_i32 = arith.constant 0 : i32
    %c0_i32_0 = arith.constant 0 : i32
    return %arg0, %c0_i32 : i32, i32
  }
  func.func @transform_1(%arg0: i32) -> (i32, i32) {
    %c0_i32 = arith.constant 0 : i32
    %c0_i32_0 = arith.constant 0 : i32
    %c0_i32_1 = arith.constant 0 : i32
    return %c0_i32, %c0_i32_0 : i32, i32
  }
  func.func @transform_2(%arg0: i32) -> (i32, i32) {
    %c0_i32 = arith.constant 0 : i32
    %c0_i32_0 = arith.constant 0 : i32
    return %arg0, %c0_i32 : i32, i32
  }
}

</mosaic_0001>

<llo_original>
// kernel: tpu_custom_call.1
$region0: #{tpu_custom_call.1}
  #allocation0 [shape = 'u32[]', space=smem, size = 0x4, offset = 0x4, fixed_abs, tag = 'smem constant byte address 0x4 - core index']
  #allocation1 [shape = 'u32[144,128]{1,0:T(1,128)}', space=vmem, size = 0x12000, scoped, tag = 'internal scratch']
  %s0 = inlined_call_operand.vmem [shape: f32[256,32], index: 0, kind: input, shape index: {}]
  %s1 = inlined_call_operand.vmem [shape: f32[32,128], index: 1, kind: input, shape index: {}]
  %s2 = inlined_call_operand.hbm [shape: f32[256,128], index: 2, kind: output, shape index: {}]
  %s3 = sld [smem:[#allocation0]]
  $region41: #{tpu_custom_call.1} parent=0
    _
  %s5 = ssub.s32 1, %s3
  %s6 = scalar_select 0, %s5, %s3
  $region1: #{tpu_custom_call.1} parent=0
    #allocation2 [shape = 'u8[131072]{0}', space=vmem, size = 0x20000, scoped, tag = 'output window, operand 0']
    #allocation3 [shape = 's32[2]{0}', space=sflag, size = 0x8, scoped, tag = 'scoped memory for tpu_custom_call.1']
    %7 = vsyncpa [#allocation3], 0
    %s8 = scalar_lea.sflag [#allocation3], 1
    %9 = vsyncpa %s8, 0
    loop: start=0, step=1, limit=4
    $region2: #{tpu_custom_call.1} parent=1 // loop_pre_header
      _
    $region3: #{tpu_custom_call.1} parent=1 // loop_header
      %s11 = sphi 0, %s15
      %p12 = scmp.ge.s32.totalorder %s11, 4
      %s21 = sphi 0, %s23
      %s24 = sphi 0, %s21
      %s25 = sphi 0, %s24
      %s41 = sphi 0, %s25
      %s45 = sphi 0, %s45
      %s47 = sphi 0, %s45
      %s48 = sphi 0, %s47
      %s62 = sphi 0, %s48
      %s68 = sphi 0, %s70
      %s71 = sphi 0, %s68
      %s72 = sphi 0, %s71
      %s88 = sphi 0, %s72
    $region4: #{tpu_custom_call.1} parent=1 // loop_header_branch
      %14 = sbr.rel (%p12) target = $region8
    $region5: #{tpu_custom_call.1} parent=1 // loop_body
      %s16 = ssub.s32 %s11, 1
      %s17 = ssub.s32 %s11, 2
      %s18 = sadd.s32 %s11, 1
      %s19 = ssub.s32 %s11, %s18
      %p20 = scmp.eq.s32.totalorder %s19, 0
      %s22 = sadd.s32 %s21, 1
      %s23 = scalar_select %p20, %s21, %s22
      %p26 = pneg %p20
      %p27 = scmp.eq.s32.totalorder %s11, 1
      %p28 = por %p26, %p27
      %p29 = scmp.ne.s32.totalorder %s21, %s24
      %p30 = scmp.eq.s32.totalorder %s11, 0
      %p31 = por %p29, %p30
      %p32 = scmp.ne.s32.totalorder %s21, %s24
      %p33 = scmp.eq.s32.totalorder %s16, 1
      %p34 = por %p32, %p33
      %p35 = scmp.ne.s32.totalorder %s24, %s25
      %p36 = scmp.eq.s32.totalorder %s16, 0
      %p37 = por %p35, %p36
      %p38 = scmp.ne.s32.totalorder %s24, %s25
      %p39 = scmp.eq.s32.totalorder %s17, 1
      %p40 = por %p38, %p39
      %p42 = scmp.ne.s32.totalorder %s25, %s41
      %p43 = scmp.eq.s32.totalorder %s17, 0
      %p44 = por %p42, %p43
      %s46 = sadd.s32 %s45, 1
      %p49 = scmp.eq.s32.totalorder %s11, 1
      %p50 = scmp.ne.s32.totalorder %s45, %s47
      %p51 = scmp.eq.s32.totalorder %s11, 0
      %p52 = por %p50, %p51
      %p53 = scmp.ne.s32.totalorder %s45, %s47
      %p54 = scmp.eq.s32.totalorder %s16, 1
      %p55 = por %p53, %p54
      %p56 = scmp.ne.s32.totalorder %s47, %s48
      %p57 = scmp.eq.s32.totalorder %s16, 0
      %p58 = por %p56, %p57
      %p59 = scmp.ne.s32.totalorder %s47, %s48
      %p60 = scmp.eq.s32.totalorder %s17, 1
      %p61 = por %p59, %p60
      %p63 = scmp.ne.s32.totalorder %s48, %s62
      %p64 = scmp.eq.s32.totalorder %s17, 0
      %p65 = por %p63, %p64
      %s66 = ssub.s32 %s11, %s18
      %p67 = scmp.eq.s32.totalorder %s66, 0
      %s69 = sadd.s32 %s68, 1
      %s70 = scalar_select %p67, %s68, %s69
      %p73 = pneg %p67
      %p74 = scmp.eq.s32.totalorder %s11, 1
      %p75 = por %p73, %p74
      %p76 = scmp.ne.s32.totalorder %s68, %s71
      %p77 = scmp.eq.s32.totalorder %s11, 0
      %p78 = por %p76, %p77
      %p79 = scmp.ne.s32.totalorder %s68, %s71
      %p80 = scmp.eq.s32.totalorder %s16, 1
      %p81 = por %p79, %p80
      %p82 = scmp.ne.s32.totalorder %s71, %s72
      %p83 = scmp.eq.s32.totalorder %s16, 0
      %p84 = por %p82, %p83
      %p85 = scmp.ne.s32.totalorder %s71, %s72
      %p86 = scmp.eq.s32.totalorder %s17, 1
      %p87 = por %p85, %p86
      %p89 = scmp.ne.s32.totalorder %s72, %s88
      %p90 = scmp.eq.s32.totalorder %s17, 0
      %p91 = por %p89, %p90
      %p92 = scmp.le.s32.totalorder 1, %s11
      %p93 = scmp.lt.s32.totalorder %s11, 3
      %p94 = pnand %p92, %p93
      %p95 = pneg %p94
      // Predicated region
      $region9: #{tpu_custom_call.1} parent=5 // pred_check
        _
      $region10: #{tpu_custom_call.1} parent=5 // pred_check_branch
        %97 = sbr.rel (%p94) target = $region12
      $region11: #{tpu_custom_call.1} parent=5 // pred_region
        %s98 = ssub.s32 %s11, 1
        // Predicated region
        $region13: #{tpu_custom_call.1} parent=11 // pred_check
          %p99 = pneg %p58
        $region14: #{tpu_custom_call.1} parent=11 // pred_check_branch
          %101 = sbr.rel (%p99) target = $region16
        $region15: #{tpu_custom_call.1} parent=11 // pred_region
          _
        $region16: #{tpu_custom_call.1} parent=11 // pred_fallthru
          _
      $region12: #{tpu_custom_call.1} parent=5 // pred_fallthru
        _
      %p102 = scmp.lt.s32.totalorder %s11, 2
      // Predicated region
      $region17: #{tpu_custom_call.1} parent=5 // pred_check
        %p103 = pneg %p102
      $region18: #{tpu_custom_call.1} parent=5 // pred_check_branch
        %105 = sbr.rel (%p103) target = $region20
      $region19: #{tpu_custom_call.1} parent=5 // pred_region
        // Predicated region
        $region21: #{tpu_custom_call.1} parent=19 // pred_check
          %p106 = pneg %p31
        $region22: #{tpu_custom_call.1} parent=19 // pred_check_branch
          %108 = sbr.rel (%p106) target = $region24
        $region23: #{tpu_custom_call.1} parent=19 // pred_region
          %s109 = smul.u32 16, %s11
          %p110 = scmp.lt.s32.totalorder %s109, 31
          %s111 = scalar_select %p110, %s109, 31
          %s112 = smul.addr %s111, 8
          %s113 = scalar_lea.vmem %s0, %s112
          %s114 = smul.u32 16, %s11
        $region24: #{tpu_custom_call.1} parent=19 // pred_fallthru
          _
      $region20: #{tpu_custom_call.1} parent=5 // pred_fallthru
        _
      %p115 = scmp.le.s32.totalorder 1, %s11
      %p116 = scmp.lt.s32.totalorder %s11, 3
      %p117 = pnand %p115, %p116
      %p118 = pneg %p117
      // Predicated region
      $region25: #{tpu_custom_call.1} parent=5 // pred_check
        _
      $region26: #{tpu_custom_call.1} parent=5 // pred_check_branch
        %120 = sbr.rel (%p117) target = $region28
      $region27: #{tpu_custom_call.1} parent=5 // pred_region
        %s121 = ssub.s32 %s11, 1
        %s122 = smul.u32 16, %s16
        %p123 = scmp.lt.s32.totalorder %s122, 31
        %s124 = scalar_select %p123, %s122, 31
        %s125 = smul.addr %s124, 8
        %s126 = scalar_lea.vmem %s0, %s125
        %p127 = pneg %p37
        %p128 = pneg %p34
        %p129 = pneg %p58
        %p130 = pneg %p55
        %p131 = pneg %p84
        %p132 = pneg %p81
        %s133 = sand.u32 %s71, 1
        %s134 = scalar_lea.sflag [#allocation3], %s133
        %s135 = sand.u32 %s71, 1
        %s136 = smul.addr %s135, 128
        %s137 = scalar_lea.vmem [#allocation2], %s136
        %s138 = smul.u32 16, %s16
        %p139 = scmp.lt.s32.totalorder %s138, 31
        %s140 = scalar_select %p139, %s138, 31
        %s141 = smul.addr %s140, 8
        %s142 = scalar_lea.vmem %s0, %s141
        %s143 = smul.u32 16, %s16
        %s144 = smul.u32 16, %s16
        %v145 = vld [vmem:[%s142] sm:$0xff]
        %v146 = vld [vmem:[%s142 + $0x8] sm:$0xff]
        %v147 = vld [vmem:[%s142 + $0x10] sm:$0xff]
        %v148 = vld [vmem:[%s142 + $0x18] sm:$0xff]
        %v149 = vld [vmem:[%s142 + $0x20] sm:$0xff]
        %v150 = vld [vmem:[%s142 + $0x28] sm:$0xff]
        %v151 = vld [vmem:[%s142 + $0x30] sm:$0xff]
        %v152 = vld [vmem:[%s142 + $0x38] sm:$0xff]
        %v153 = vld [vmem:[%s142 + $0x40] sm:$0xff]
        %v154 = vld [vmem:[%s142 + $0x48] sm:$0xff]
        %v155 = vld [vmem:[%s142 + $0x50] sm:$0xff]
        %v156 = vld [vmem:[%s142 + $0x58] sm:$0xff]
        %v157 = vld [vmem:[%s142 + $0x60] sm:$0xff]
        %v158 = vld [vmem:[%s142 + $0x68] sm:$0xff]
        %v159 = vld [vmem:[%s142 + $0x70] sm:$0xff]
        %v160 = vld [vmem:[%s142 + $0x78] sm:$0xff]
        %v161 = vld [vmem:[%s1] sm:$0xff]
        %v162 = vld [vmem:[%s1 + $0x8] sm:$0xff]
        %v163 = vld [vmem:[%s1 + $0x10] sm:$0xff]
        %v164 = vld [vmem:[%s1 + $0x18] sm:$0xff]
        %vm165 = vcmask 261120
        %v167 = vsel %vm165, %v145, 0
        %v170 = vsel %vm165, %v146, 0
        %v173 = vsel %vm165, %v147, 0
        %v176 = vsel %vm165, %v148, 0
        %v179 = vsel %vm165, %v149, 0
        %v182 = vsel %vm165, %v150, 0
        %v185 = vsel %vm165, %v151, 0
        %v188 = vsel %vm165, %v152, 0
        %v191 = vsel %vm165, %v153, 0
        %v194 = vsel %vm165, %v154, 0
        %v197 = vsel %vm165, %v155, 0
        %v200 = vsel %vm165, %v156, 0
        %v203 = vsel %vm165, %v157, 0
        %v206 = vsel %vm165, %v158, 0
        %v209 = vsel %vm165, %v159, 0
        %v212 = vsel %vm165, %v160, 0
        %214 = vmatprep.subr.mxu0 0.0
        %215 = vmatpush1.msra.mxu0 %v161
        %216 = vmatprep.subr.mxu0 0.0
        %217 = vmatpush1.msra.mxu0 %v162
        %218 = vmatprep.subr.mxu0 0.0
        %219 = vmatpush1.msra.mxu0 %v163
        %220 = vmatprep.subr.mxu0 0.0
        %221 = vmatpush1.msra.mxu0 %v164
        %222 = vmatprep.subr.mxu0 0.0
        %223 = vmatpush1.msra.mxu0 0.0
        %224 = vmatprep.subr.mxu0 0.0
        %225 = vmatpush1.msra.mxu0 0.0
        %226 = vmatprep.subr.mxu0 0.0
        %227 = vmatpush1.msra.mxu0 0.0
        %228 = vmatprep.subr.mxu0 0.0
        %229 = vmatpush1.msra.mxu0 0.0
        %230 = vmatprep.subr.mxu0 0.0
        %231 = vmatpush1.msra.mxu0 0.0
        %232 = vmatprep.subr.mxu0 0.0
        %233 = vmatpush1.msra.mxu0 0.0
        %234 = vmatprep.subr.mxu0 0.0
        %235 = vmatpush1.msra.mxu0 0.0
        %236 = vmatprep.subr.mxu0 0.0
        %237 = vmatpush1.msra.mxu0 0.0
        %238 = vmatprep.subr.mxu0 0.0
        %239 = vmatpush1.msra.mxu0 0.0
        %240 = vmatprep.subr.mxu0 0.0
        %241 = vmatpush1.msra.mxu0 0.0
        %242 = vmatprep.subr.mxu0 0.0
        %243 = vmatpush1.msra.mxu0 0.0
        %244 = vmatprep.subr.mxu0 0.0
        %245 = vmatpush1.msra.mxu0 0.0
        %246 = vmatprep.subr.mxu0 0.0
        %247 = vmatpush1.msra.mxu0 0.0
        %248 = vmatprep.subr.mxu0 0.0
        %249 = vmatpush1.msra.mxu0 0.0
        %250 = vmatprep.subr.mxu0 0.0
        %251 = vmatpush1.msra.mxu0 0.0
        %252 = vmatprep.subr.mxu0 0.0
        %253 = vmatpush1.msra.mxu0 0.0
        %254 = vmatprep.subr.mxu0 0.0
        %255 = vmatpush1.msra.mxu0 0.0
        %256 = vmatprep.subr.mxu0 0.0
        %257 = vmatpush1.msra.mxu0 0.0
        %258 = vmatprep.subr.mxu0 0.0
        %259 = vmatpush1.msra.mxu0 0.0
        %260 = vmatprep.subr.mxu0 0.0
        %261 = vmatpush1.msra.mxu0 0.0
        %262 = vmatprep.subr.mxu0 0.0
        %263 = vmatpush1.msra.mxu0 0.0
        %264 = vmatprep.subr.mxu0 0.0
        %265 = vmatpush1.msra.mxu0 0.0
        %266 = vmatprep.subr.mxu0 0.0
        %267 = vmatpush1.msra.mxu0 0.0
        %268 = vmatprep.subr.mxu0 0.0
        %269 = vmatpush1.msra.mxu0 0.0
        %270 = vmatprep.subr.mxu0 0.0
        %271 = vmatpush1.msra.mxu0 0.0
        %272 = vmatprep.subr.mxu0 0.0
        %273 = vmatpush1.msra.mxu0 0.0
        %274 = vmatprep.subr.mxu0 0.0
        %275 = vmatpush1.msra.mxu0 0.0
        %276 = vmatprep.subr.mxu0 0.0
        %277 = vmatpush1.msra.mxu0 0.0
        %278 = vmatprep.mubr.f32.mxu0 0.0
        %279 = vmatmul.mubr.f32.gmra.mrb[0].mxu0 %v167
        %v280 = vpop.f32.mrb[0].mxu0
        %v281 = vadd.f32 0.0, %v280
        %v282 = vpop.f32.mrb[0].mxu0
        %283 = vmatprep.mubr.f32.mxu0 0.0
        %284 = vmatmul.mubr.f32.gmra.mrb[0].mxu0 %v170
        %v285 = vpop.f32.mrb[0].mxu0
        %v286 = vadd.f32 0.0, %v285
        %v287 = vpop.f32.mrb[0].mxu0
        %288 = vmatprep.mubr.f32.mxu0 0.0
        %289 = vmatmul.mubr.f32.gmra.mrb[0].mxu0 %v173
        %v290 = vpop.f32.mrb[0].mxu0
        %v291 = vadd.f32 0.0, %v290
        %v292 = vpop.f32.mrb[0].mxu0
        %293 = vmatprep.mubr.f32.mxu0 0.0
        %294 = vmatmul.mubr.f32.gmra.mrb[0].mxu0 %v176
        %v295 = vpop.f32.mrb[0].mxu0
        %v296 = vadd.f32 0.0, %v295
        %v297 = vpop.f32.mrb[0].mxu0
        %298 = vmatprep.mubr.f32.mxu0 0.0
        %299 = vmatmul.mubr.f32.gmra.mrb[0].mxu0 %v179
        %v300 = vpop.f32.mrb[0].mxu0
        %v301 = vadd.f32 0.0, %v300
        %v302 = vpop.f32.mrb[0].mxu0
        %303 = vmatprep.mubr.f32.mxu0 0.0
        %304 = vmatmul.mubr.f32.gmra.mrb[0].mxu0 %v182
        %v305 = vpop.f32.mrb[0].mxu0
        %v306 = vadd.f32 0.0, %v305
        %v307 = vpop.f32.mrb[0].mxu0
        %308 = vmatprep.mubr.f32.mxu0 0.0
        %309 = vmatmul.mubr.f32.gmra.mrb[0].mxu0 %v185
        %v310 = vpop.f32.mrb[0].mxu0
        %v311 = vadd.f32 0.0, %v310
        %v312 = vpop.f32.mrb[0].mxu0
        %313 = vmatprep.mubr.f32.mxu0 0.0
        %314 = vmatmul.mubr.f32.gmra.mrb[0].mxu0 %v188
        %v315 = vpop.f32.mrb[0].mxu0
        %v316 = vadd.f32 0.0, %v315
        %v317 = vpop.f32.mrb[0].mxu0
        %318 = vmatprep.mubr.f32.mxu0 0.0
        %319 = vmatmul.mubr.f32.gmra.mrb[0].mxu0 %v191
        %v320 = vpop.f32.mrb[0].mxu0
        %v321 = vadd.f32 0.0, %v320
        %v322 = vpop.f32.mrb[0].mxu0
        %323 = vmatprep.mubr.f32.mxu0 0.0
        %324 = vmatmul.mubr.f32.gmra.mrb[0].mxu0 %v194
        %v325 = vpop.f32.mrb[0].mxu0
        %v326 = vadd.f32 0.0, %v325
        %v327 = vpop.f32.mrb[0].mxu0
        %328 = vmatprep.mubr.f32.mxu0 0.0
        %329 = vmatmul.mubr.f32.gmra.mrb[0].mxu0 %v197
        %v330 = vpop.f32.mrb[0].mxu0
        %v331 = vadd.f32 0.0, %v330
        %v332 = vpop.f32.mrb[0].mxu0
        %333 = vmatprep.mubr.f32.mxu0 0.0
        %334 = vmatmul.mubr.f32.gmra.mrb[0].mxu0 %v200
        %v335 = vpop.f32.mrb[0].mxu0
        %v336 = vadd.f32 0.0, %v335
        %v337 = vpop.f32.mrb[0].mxu0
        %338 = vmatprep.mubr.f32.mxu0 0.0
        %339 = vmatmul.mubr.f32.gmra.mrb[0].mxu0 %v203
        %v340 = vpop.f32.mrb[0].mxu0
        %v341 = vadd.f32 0.0, %v340
        %v342 = vpop.f32.mrb[0].mxu0
        %343 = vmatprep.mubr.f32.mxu0 0.0
        %344 = vmatmul.mubr.f32.gmra.mrb[0].mxu0 %v206
        %v345 = vpop.f32.mrb[0].mxu0
        %v346 = vadd.f32 0.0, %v345
        %v347 = vpop.f32.mrb[0].mxu0
        %348 = vmatprep.mubr.f32.mxu0 0.0
        %349 = vmatmul.mubr.f32.gmra.mrb[0].mxu0 %v209
        %v350 = vpop.f32.mrb[0].mxu0
        %v351 = vadd.f32 0.0, %v350
        %v352 = vpop.f32.mrb[0].mxu0
        %353 = vmatprep.mubr.f32.mxu0 0.0
        %354 = vmatmul.mubr.f32.gmra.mrb[0].mxu0 %v212
        %v355 = vpop.f32.mrb[0].mxu0
        %v356 = vadd.f32 0.0, %v355
        %v357 = vpop.f32.mrb[0].mxu0
        %358 = vdwg.mxu0
        %vm359 = vcmask 556544
        %v360 = vsel %vm359, %v281, -inf
        %361 = vmax.xlane.f32.xlu0 %v360
        %v362 = vpop.xlane.xlu0 %361
        %v363 = vsel %vm359, %v286, -inf
        %364 = vmax.xlane.f32.xlu0 %v363
        %v365 = vpop.xlane.xlu0 %364
        %v366 = vsel %vm359, %v291, -inf
        %367 = vmax.xlane.f32.xlu0 %v366
        %v368 = vpop.xlane.xlu0 %367
        %v369 = vsel %vm359, %v296, -inf
        %370 = vmax.xlane.f32.xlu0 %v369
        %v371 = vpop.xlane.xlu0 %370
        %v372 = vsel %vm359, %v301, -inf
        %373 = vmax.xlane.f32.xlu0 %v372
        %v374 = vpop.xlane.xlu0 %373
        %v375 = vsel %vm359, %v306, -inf
        %376 = vmax.xlane.f32.xlu0 %v375
        %v377 = vpop.xlane.xlu0 %376
        %v378 = vsel %vm359, %v311, -inf
        %379 = vmax.xlane.f32.xlu0 %v378
        %v380 = vpop.xlane.xlu0 %379
        %v381 = vsel %vm359, %v316, -inf
        %382 = vmax.xlane.f32.xlu0 %v381
        %v383 = vpop.xlane.xlu0 %382
        %v384 = vsel %vm359, %v321, -inf
        %385 = vmax.xlane.f32.xlu0 %v384
        %v386 = vpop.xlane.xlu0 %385
        %v387 = vsel %vm359, %v326, -inf
        %388 = vmax.xlane.f32.xlu0 %v387
        %v389 = vpop.xlane.xlu0 %388
        %v390 = vsel %vm359, %v331, -inf
        %391 = vmax.xlane.f32.xlu0 %v390
        %v392 = vpop.xlane.xlu0 %391
        %v393 = vsel %vm359, %v336, -inf
        %394 = vmax.xlane.f32.xlu0 %v393
        %v395 = vpop.xlane.xlu0 %394
        %v396 = vsel %vm359, %v341, -inf
        %397 = vmax.xlane.f32.xlu0 %v396
        %v398 = vpop.xlane.xlu0 %397
        %v399 = vsel %vm359, %v346, -inf
        %400 = vmax.xlane.f32.xlu0 %v399
        %v401 = vpop.xlane.xlu0 %400
        %v402 = vsel %vm359, %v351, -inf
        %403 = vmax.xlane.f32.xlu0 %v402
        %v404 = vpop.xlane.xlu0 %403
        %v405 = vsel %vm359, %v356, -inf
        %406 = vmax.xlane.f32.xlu0 %v405
        %v407 = vpop.xlane.xlu0 %406
        %v408 = vsub.f32 %v281, %v362
        %v409 = vsub.f32 %v286, %v365
        %v410 = vsub.f32 %v291, %v368
        %v411 = vsub.f32 %v296, %v371
        %v412 = vsub.f32 %v301, %v374
        %v413 = vsub.f32 %v306, %v377
        %v414 = vsub.f32 %v311, %v380
        %v415 = vsub.f32 %v316, %v383
        %v416 = vsub.f32 %v321, %v386
        %v417 = vsub.f32 %v326, %v389
        %v418 = vsub.f32 %v331, %v392
        %v419 = vsub.f32 %v336, %v395
        %v420 = vsub.f32 %v341, %v398
        %v421 = vsub.f32 %v346, %v401
        %v422 = vsub.f32 %v351, %v404
        %v423 = vsub.f32 %v356, %v407
        %v424 = vmul.f32 %v408, 1.442695
        %v425 = vpow.pop %v424
        %v426 = vmul.f32 %v409, 1.442695
        %v427 = vpow.pop %v426
        %v428 = vmul.f32 %v410, 1.442695
        %v429 = vpow.pop %v428
        %v430 = vmul.f32 %v411, 1.442695
        %v431 = vpow.pop %v430
        %v432 = vmul.f32 %v412, 1.442695
        %v433 = vpow.pop %v432
        %v434 = vmul.f32 %v413, 1.442695
        %v435 = vpow.pop %v434
        %v436 = vmul.f32 %v414, 1.442695
        %v437 = vpow.pop %v436
        %v438 = vmul.f32 %v415, 1.442695
        %v439 = vpow.pop %v438
        %v440 = vmul.f32 %v416, 1.442695
        %v441 = vpow.pop %v440
        %v442 = vmul.f32 %v417, 1.442695
        %v443 = vpow.pop %v442
        %v444 = vmul.f32 %v418, 1.442695
        %v445 = vpow.pop %v444
        %v446 = vmul.f32 %v419, 1.442695
        %v447 = vpow.pop %v446
        %v448 = vmul.f32 %v420, 1.442695
        %v449 = vpow.pop %v448
        %v450 = vmul.f32 %v421, 1.442695
        %v451 = vpow.pop %v450
        %v452 = vmul.f32 %v422, 1.442695
        %v453 = vpow.pop %v452
        %v454 = vmul.f32 %v423, 1.442695
        %v455 = vpow.pop %v454
        %472 = vrot.lane.b32.xlu0 %v425, 64
        %v473 = vpop.permute.xlu0 %472
        %474 = vrot.lane.b32.xlu0 %v427, 64
        %v475 = vpop.permute.xlu0 %474
        %476 = vrot.lane.b32.xlu0 %v429, 64
        %v477 = vpop.permute.xlu0 %476
        %478 = vrot.lane.b32.xlu0 %v431, 64
        %v479 = vpop.permute.xlu0 %478
        %480 = vrot.lane.b32.xlu0 %v433, 64
        %v481 = vpop.permute.xlu0 %480
        %482 = vrot.lane.b32.xlu0 %v435, 64
        %v483 = vpop.permute.xlu0 %482
        %484 = vrot.lane.b32.xlu0 %v437, 64
        %v485 = vpop.permute.xlu0 %484
        %486 = vrot.lane.b32.xlu0 %v439, 64
        %v487 = vpop.permute.xlu0 %486
        %488 = vrot.lane.b32.xlu0 %v441, 64
        %v489 = vpop.permute.xlu0 %488
        %490 = vrot.lane.b32.xlu0 %v443, 64
        %v491 = vpop.permute.xlu0 %490
        %492 = vrot.lane.b32.xlu0 %v445, 64
        %v493 = vpop.permute.xlu0 %492
        %494 = vrot.lane.b32.xlu0 %v447, 64
        %v495 = vpop.permute.xlu0 %494
        %496 = vrot.lane.b32.xlu0 %v449, 64
        %v497 = vpop.permute.xlu0 %496
        %498 = vrot.lane.b32.xlu0 %v451, 64
        %v499 = vpop.permute.xlu0 %498
        %500 = vrot.lane.b32.xlu0 %v453, 64
        %v501 = vpop.permute.xlu0 %500
        %502 = vrot.lane.b32.xlu0 %v455, 64
        %v503 = vpop.permute.xlu0 %502
        %vm520 = vcmask 31744
        %v521 = vsel %vm520, %v473, 0.0
        %522 = vadd.xlane.f32.xlu0 %v521
        %v523 = vpop.xlane.xlu0 %522
        %v524 = vsel %vm520, %v475, 0.0
        %525 = vadd.xlane.f32.xlu0 %v524
        %v526 = vpop.xlane.xlu0 %525
        %v527 = vsel %vm520, %v477, 0.0
        %528 = vadd.xlane.f32.xlu0 %v527
        %v529 = vpop.xlane.xlu0 %528
        %v530 = vsel %vm520, %v479, 0.0
        %531 = vadd.xlane.f32.xlu0 %v530
        %v532 = vpop.xlane.xlu0 %531
        %v533 = vsel %vm520, %v481, 0.0
        %534 = vadd.xlane.f32.xlu0 %v533
        %v535 = vpop.xlane.xlu0 %534
        %v536 = vsel %vm520, %v483, 0.0
        %537 = vadd.xlane.f32.xlu0 %v536
        %v538 = vpop.xlane.xlu0 %537
        %v539 = vsel %vm520, %v485, 0.0
        %540 = vadd.xlane.f32.xlu0 %v539
        %v541 = vpop.xlane.xlu0 %540
        %v542 = vsel %vm520, %v487, 0.0
        %543 = vadd.xlane.f32.xlu0 %v542
        %v544 = vpop.xlane.xlu0 %543
        %v545 = vsel %vm520, %v489, 0.0
        %546 = vadd.xlane.f32.xlu0 %v545
        %v547 = vpop.xlane.xlu0 %546
        %v548 = vsel %vm520, %v491, 0.0
        %549 = vadd.xlane.f32.xlu0 %v548
        %v550 = vpop.xlane.xlu0 %549
        %v551 = vsel %vm520, %v493, 0.0
        %552 = vadd.xlane.f32.xlu0 %v551
        %v553 = vpop.xlane.xlu0 %552
        %v554 = vsel %vm520, %v495, 0.0
        %555 = vadd.xlane.f32.xlu0 %v554
        %v556 = vpop.xlane.xlu0 %555
        %v557 = vsel %vm520, %v497, 0.0
        %558 = vadd.xlane.f32.xlu0 %v557
        %v559 = vpop.xlane.xlu0 %558
        %v560 = vsel %vm520, %v499, 0.0
        %561 = vadd.xlane.f32.xlu0 %v560
        %v562 = vpop.xlane.xlu0 %561
        %v563 = vsel %vm520, %v501, 0.0
        %564 = vadd.xlane.f32.xlu0 %v563
        %v565 = vpop.xlane.xlu0 %564
        %v566 = vsel %vm520, %v503, 0.0
        %567 = vadd.xlane.f32.xlu0 %v566
        %v568 = vpop.xlane.xlu0 %567
        %v569 = vrcp.pop %v523
        %v570 = vmul.f32 %v425, %v569
        %v571 = vrcp.pop %v526
        %v572 = vmul.f32 %v427, %v571
        %v573 = vrcp.pop %v529
        %v574 = vmul.f32 %v429, %v573
        %v575 = vrcp.pop %v532
        %v576 = vmul.f32 %v431, %v575
        %v577 = vrcp.pop %v535
        %v578 = vmul.f32 %v433, %v577
        %v579 = vrcp.pop %v538
        %v580 = vmul.f32 %v435, %v579
        %v581 = vrcp.pop %v541
        %v582 = vmul.f32 %v437, %v581
        %v583 = vrcp.pop %v544
        %v584 = vmul.f32 %v439, %v583
        %v585 = vrcp.pop %v547
        %v586 = vmul.f32 %v441, %v585
        %v587 = vrcp.pop %v550
        %v588 = vmul.f32 %v443, %v587
        %v589 = vrcp.pop %v553
        %v590 = vmul.f32 %v445, %v589
        %v591 = vrcp.pop %v556
        %v592 = vmul.f32 %v447, %v591
        %v593 = vrcp.pop %v559
        %v594 = vmul.f32 %v449, %v593
        %v595 = vrcp.pop %v562
        %v596 = vmul.f32 %v451, %v595
        %v597 = vrcp.pop %v565
        %v598 = vmul.f32 %v453, %v597
        %v599 = vrcp.pop %v568
        %v600 = vmul.f32 %v455, %v599
        %602 = vset.pattern.permute.xlu0 64
        %603 = vperm.xlu0 %602, %v570
        %v604 = vpop.permute.xlu0 %603
        %607 = vset.pattern.permute.xlu0 64
        %608 = vperm.xlu0 %607, %v572
        %v609 = vpop.permute.xlu0 %608
        %612 = vset.pattern.permute.xlu0 64
        %613 = vperm.xlu0 %612, %v574
        %v614 = vpop.permute.xlu0 %613
        %617 = vset.pattern.permute.xlu0 64
        %618 = vperm.xlu0 %617, %v576
        %v619 = vpop.permute.xlu0 %618
        %622 = vset.pattern.permute.xlu0 64
        %623 = vperm.xlu0 %622, %v578
        %v624 = vpop.permute.xlu0 %623
        %627 = vset.pattern.permute.xlu0 64
        %628 = vperm.xlu0 %627, %v580
        %v629 = vpop.permute.xlu0 %628
        %632 = vset.pattern.permute.xlu0 64
        %633 = vperm.xlu0 %632, %v582
        %v634 = vpop.permute.xlu0 %633
        %637 = vset.pattern.permute.xlu0 64
        %638 = vperm.xlu0 %637, %v584
        %v639 = vpop.permute.xlu0 %638
        %642 = vset.pattern.permute.xlu0 64
        %643 = vperm.xlu0 %642, %v586
        %v644 = vpop.permute.xlu0 %643
        %647 = vset.pattern.permute.xlu0 64
        %648 = vperm.xlu0 %647, %v588
        %v649 = vpop.permute.xlu0 %648
        %652 = vset.pattern.permute.xlu0 64
        %653 = vperm.xlu0 %652, %v590
        %v654 = vpop.permute.xlu0 %653
        %657 = vset.pattern.permute.xlu0 64
        %658 = vperm.xlu0 %657, %v592
        %v659 = vpop.permute.xlu0 %658
        %662 = vset.pattern.permute.xlu0 64
        %663 = vperm.xlu0 %662, %v594
        %v664 = vpop.permute.xlu0 %663
        %667 = vset.pattern.permute.xlu0 64
        %668 = vperm.xlu0 %667, %v596
        %v669 = vpop.permute.xlu0 %668
        %672 = vset.pattern.permute.xlu0 64
        %673 = vperm.xlu0 %672, %v598
        %v674 = vpop.permute.xlu0 %673
        %677 = vset.pattern.permute.xlu0 64
        %678 = vperm.xlu0 %677, %v600
        %v679 = vpop.permute.xlu0 %678
        %v681 = vmul.f32 %v281, %v604
        %v682 = vmul.f32 %v286, %v609
        %v683 = vmul.f32 %v291, %v614
        %v684 = vmul.f32 %v296, %v619
        %v685 = vmul.f32 %v301, %v624
        %v686 = vmul.f32 %v306, %v629
        %v687 = vmul.f32 %v311, %v634
        %v688 = vmul.f32 %v316, %v639
        %v689 = vmul.f32 %v321, %v644
        %v690 = vmul.f32 %v326, %v649
        %v691 = vmul.f32 %v331, %v654
        %v692 = vmul.f32 %v336, %v659
        %v693 = vmul.f32 %v341, %v664
        %v694 = vmul.f32 %v346, %v669
        %v695 = vmul.f32 %v351, %v674
        %v696 = vmul.f32 %v356, %v679
        %v697 = vadd.f32 %v681, 0.0
        %v698 = vadd.f32 %v682, 0.0
        %v699 = vadd.f32 %v683, 0.0
        %v700 = vadd.f32 %v684, 0.0
        %v701 = vadd.f32 %v685, 0.0
        %v702 = vadd.f32 %v686, 0.0
        %v703 = vadd.f32 %v687, 0.0
        %v704 = vadd.f32 %v688, 0.0
        %v705 = vadd.f32 %v689, 0.0
        %v706 = vadd.f32 %v690, 0.0
        %v707 = vadd.f32 %v691, 0.0
        %v708 = vadd.f32 %v692, 0.0
        %v709 = vadd.f32 %v693, 0.0
        %v710 = vadd.f32 %v694, 0.0
        %v711 = vadd.f32 %v695, 0.0
        %v712 = vadd.f32 %v696, 0.0
        %713 = vset.pattern.permute.xlu0 65
        %714 = vperm.xlu0 %713, %v570
        %v715 = vpop.permute.xlu0 %714
        %717 = vset.pattern.permute.xlu0 65
        %718 = vperm.xlu0 %717, %v572
        %v719 = vpop.permute.xlu0 %718
        %721 = vset.pattern.permute.xlu0 65
        %722 = vperm.xlu0 %721, %v574
        %v723 = vpop.permute.xlu0 %722
        %725 = vset.pattern.permute.xlu0 65
        %726 = vperm.xlu0 %725, %v576
        %v727 = vpop.permute.xlu0 %726
        %729 = vset.pattern.permute.xlu0 65
        %730 = vperm.xlu0 %729, %v578
        %v731 = vpop.permute.xlu0 %730
        %733 = vset.pattern.permute.xlu0 65
        %734 = vperm.xlu0 %733, %v580
        %v735 = vpop.permute.xlu0 %734
        %737 = vset.pattern.permute.xlu0 65
        %738 = vperm.xlu0 %737, %v582
        %v739 = vpop.permute.xlu0 %738
        %741 = vset.pattern.permute.xlu0 65
        %742 = vperm.xlu0 %741, %v584
        %v743 = vpop.permute.xlu0 %742
        %745 = vset.pattern.permute.xlu0 65
        %746 = vperm.xlu0 %745, %v586
        %v747 = vpop.permute.xlu0 %746
        %749 = vset.pattern.permute.xlu0 65
        %750 = vperm.xlu0 %749, %v588
        %v751 = vpop.permute.xlu0 %750
        %753 = vset.pattern.permute.xlu0 65
        %754 = vperm.xlu0 %753, %v590
        %v755 = vpop.permute.xlu0 %754
        %757 = vset.pattern.permute.xlu0 65
        %758 = vperm.xlu0 %757, %v592
        %v759 = vpop.permute.xlu0 %758
        %761 = vset.pattern.permute.xlu0 65
        %762 = vperm.xlu0 %761, %v594
        %v763 = vpop.permute.xlu0 %762
        %765 = vset.pattern.permute.xlu0 65
        %766 = vperm.xlu0 %765, %v596
        %v767 = vpop.permute.xlu0 %766
        %769 = vset.pattern.permute.xlu0 65
        %770 = vperm.xlu0 %769, %v598
        %v771 = vpop.permute.xlu0 %770
        %773 = vset.pattern.permute.xlu0 65
        %774 = vperm.xlu0 %773, %v600
        %v775 = vpop.permute.xlu0 %774
        %v777 = vmul.f32 %v281, %v715
        %v778 = vmul.f32 %v286, %v719
        %v779 = vmul.f32 %v291, %v723
        %v780 = vmul.f32 %v296, %v727
        %v781 = vmul.f32 %v301, %v731
        %v782 = vmul.f32 %v306, %v735
        %v783 = vmul.f32 %v311, %v739
        %v784 = vmul.f32 %v316, %v743
        %v785 = vmul.f32 %v321, %v747
        %v786 = vmul.f32 %v326, %v751
        %v787 = vmul.f32 %v331, %v755
        %v788 = vmul.f32 %v336, %v759
        %v789 = vmul.f32 %v341, %v763
        %v790 = vmul.f32 %v346, %v767
        %v791 = vmul.f32 %v351, %v771
        %v792 = vmul.f32 %v356, %v775
        %809 = vrot.lane.b32.xlu0 %v777, 112
        %v810 = vpop.permute.xlu0 %809
        %811 = vrot.lane.b32.xlu0 %v778, 112
        %v812 = vpop.permute.xlu0 %811
        %813 = vrot.lane.b32.xlu0 %v779, 112
        %v814 = vpop.permute.xlu0 %813
        %815 = vrot.lane.b32.xlu0 %v780, 112
        %v816 = vpop.permute.xlu0 %815
        %817 = vrot.lane.b32.xlu0 %v781, 112
        %v818 = vpop.permute.xlu0 %817
        %819 = vrot.lane.b32.xlu0 %v782, 112
        %v820 = vpop.permute.xlu0 %819
        %821 = vrot.lane.b32.xlu0 %v783, 112
        %v822 = vpop.permute.xlu0 %821
        %823 = vrot.lane.b32.xlu0 %v784, 112
        %v824 = vpop.permute.xlu0 %823
        %825 = vrot.lane.b32.xlu0 %v785, 112
        %v826 = vpop.permute.xlu0 %825
        %827 = vrot.lane.b32.xlu0 %v786, 112
        %v828 = vpop.permute.xlu0 %827
        %829 = vrot.lane.b32.xlu0 %v787, 112
        %v830 = vpop.permute.xlu0 %829
        %831 = vrot.lane.b32.xlu0 %v788, 112
        %v832 = vpop.permute.xlu0 %831
        %833 = vrot.lane.b32.xlu0 %v789, 112
        %v834 = vpop.permute.xlu0 %833
        %835 = vrot.lane.b32.xlu0 %v790, 112
        %v836 = vpop.permute.xlu0 %835
        %837 = vrot.lane.b32.xlu0 %v791, 112
        %v838 = vpop.permute.xlu0 %837
        %839 = vrot.lane.b32.xlu0 %v792, 112
        %v840 = vpop.permute.xlu0 %839
        %v857 = vadd.f32 %v697, %v810
        %v858 = vadd.f32 %v698, %v812
        %v859 = vadd.f32 %v699, %v814
        %v860 = vadd.f32 %v700, %v816
        %v861 = vadd.f32 %v701, %v818
        %v862 = vadd.f32 %v702, %v820
        %v863 = vadd.f32 %v703, %v822
        %v864 = vadd.f32 %v704, %v824
        %v865 = vadd.f32 %v705, %v826
        %v866 = vadd.f32 %v706, %v828
        %v867 = vadd.f32 %v707, %v830
        %v868 = vadd.f32 %v708, %v832
        %v869 = vadd.f32 %v709, %v834
        %v870 = vadd.f32 %v710, %v836
        %v871 = vadd.f32 %v711, %v838
        %v872 = vadd.f32 %v712, %v840
        %873 = vset.pattern.permute.xlu0 66
        %874 = vperm.xlu0 %873, %v570
        %v875 = vpop.permute.xlu0 %874
        %877 = vset.pattern.permute.xlu0 66
        %878 = vperm.xlu0 %877, %v572
        %v879 = vpop.permute.xlu0 %878
        %881 = vset.pattern.permute.xlu0 66
        %882 = vperm.xlu0 %881, %v574
        %v883 = vpop.permute.xlu0 %882
        %885 = vset.pattern.permute.xlu0 66
        %886 = vperm.xlu0 %885, %v576
        %v887 = vpop.permute.xlu0 %886
        %889 = vset.pattern.permute.xlu0 66
        %890 = vperm.xlu0 %889, %v578
        %v891 = vpop.permute.xlu0 %890
        %893 = vset.pattern.permute.xlu0 66
        %894 = vperm.xlu0 %893, %v580
        %v895 = vpop.permute.xlu0 %894
        %897 = vset.pattern.permute.xlu0 66
        %898 = vperm.xlu0 %897, %v582
        %v899 = vpop.permute.xlu0 %898
        %901 = vset.pattern.permute.xlu0 66
        %902 = vperm.xlu0 %901, %v584
        %v903 = vpop.permute.xlu0 %902
        %905 = vset.pattern.permute.xlu0 66
        %906 = vperm.xlu0 %905, %v586
        %v907 = vpop.permute.xlu0 %906
        %909 = vset.pattern.permute.xlu0 66
        %910 = vperm.xlu0 %909, %v588
        %v911 = vpop.permute.xlu0 %910
        %913 = vset.pattern.permute.xlu0 66
        %914 = vperm.xlu0 %913, %v590
        %v915 = vpop.permute.xlu0 %914
        %917 = vset.pattern.permute.xlu0 66
        %918 = vperm.xlu0 %917, %v592
        %v919 = vpop.permute.xlu0 %918
        %921 = vset.pattern.permute.xlu0 66
        %922 = vperm.xlu0 %921, %v594
        %v923 = vpop.permute.xlu0 %922
        %925 = vset.pattern.permute.xlu0 66
        %926 = vperm.xlu0 %925, %v596
        %v927 = vpop.permute.xlu0 %926
        %929 = vset.pattern.permute.xlu0 66
        %930 = vperm.xlu0 %929, %v598
        %v931 = vpop.permute.xlu0 %930
        %933 = vset.pattern.permute.xlu0 66
        %934 = vperm.xlu0 %933, %v600
        %v935 = vpop.permute.xlu0 %934
        %v937 = vmul.f32 %v281, %v875
        %v938 = vmul.f32 %v286, %v879
        %v939 = vmul.f32 %v291, %v883
        %v940 = vmul.f32 %v296, %v887
        %v941 = vmul.f32 %v301, %v891
        %v942 = vmul.f32 %v306, %v895
        %v943 = vmul.f32 %v311, %v899
        %v944 = vmul.f32 %v316, %v903
        %v945 = vmul.f32 %v321, %v907
        %v946 = vmul.f32 %v326, %v911
        %v947 = vmul.f32 %v331, %v915
        %v948 = vmul.f32 %v336, %v919
        %v949 = vmul.f32 %v341, %v923
        %v950 = vmul.f32 %v346, %v927
        %v951 = vmul.f32 %v351, %v931
        %v952 = vmul.f32 %v356, %v935
        %969 = vrot.lane.b32.xlu0 %v937, 96
        %v970 = vpop.permute.xlu0 %969
        %971 = vrot.lane.b32.xlu0 %v938, 96
        %v972 = vpop.permute.xlu0 %971
        %973 = vrot.lane.b32.xlu0 %v939, 96
        %v974 = vpop.permute.xlu0 %973
        %975 = vrot.lane.b32.xlu0 %v940, 96
        %v976 = vpop.permute.xlu0 %975
        %977 = vrot.lane.b32.xlu0 %v941, 96
        %v978 = vpop.permute.xlu0 %977
        %979 = vrot.lane.b32.xlu0 %v942, 96
        %v980 = vpop.permute.xlu0 %979
        %981 = vrot.lane.b32.xlu0 %v943, 96
        %v982 = vpop.permute.xlu0 %981
        %983 = vrot.lane.b32.xlu0 %v944, 96
        %v984 = vpop.permute.xlu0 %983
        %985 = vrot.lane.b32.xlu0 %v945, 96
        %v986 = vpop.permute.xlu0 %985
        %987 = vrot.lane.b32.xlu0 %v946, 96
        %v988 = vpop.permute.xlu0 %987
        %989 = vrot.lane.b32.xlu0 %v947, 96
        %v990 = vpop.permute.xlu0 %989
        %991 = vrot.lane.b32.xlu0 %v948, 96
        %v992 = vpop.permute.xlu0 %991
        %993 = vrot.lane.b32.xlu0 %v949, 96
        %v994 = vpop.permute.xlu0 %993
        %995 = vrot.lane.b32.xlu0 %v950, 96
        %v996 = vpop.permute.xlu0 %995
        %997 = vrot.lane.b32.xlu0 %v951, 96
        %v998 = vpop.permute.xlu0 %997
        %999 = vrot.lane.b32.xlu0 %v952, 96
        %v1000 = vpop.permute.xlu0 %999
        %v1017 = vadd.f32 %v857, %v970
        %v1018 = vadd.f32 %v858, %v972
        %v1019 = vadd.f32 %v859, %v974
        %v1020 = vadd.f32 %v860, %v976
        %v1021 = vadd.f32 %v861, %v978
        %v1022 = vadd.f32 %v862, %v980
        %v1023 = vadd.f32 %v863, %v982
        %v1024 = vadd.f32 %v864, %v984
        %v1025 = vadd.f32 %v865, %v986
        %v1026 = vadd.f32 %v866, %v988
        %v1027 = vadd.f32 %v867, %v990
        %v1028 = vadd.f32 %v868, %v992
        %v1029 = vadd.f32 %v869, %v994
        %v1030 = vadd.f32 %v870, %v996
        %v1031 = vadd.f32 %v871, %v998
        %v1032 = vadd.f32 %v872, %v1000
        %1033 = vset.pattern.permute.xlu0 67
        %1034 = vperm.xlu0 %1033, %v570
        %v1035 = vpop.permute.xlu0 %1034
        %1037 = vset.pattern.permute.xlu0 67
        %1038 = vperm.xlu0 %1037, %v572
        %v1039 = vpop.permute.xlu0 %1038
        %1041 = vset.pattern.permute.xlu0 67
        %1042 = vperm.xlu0 %1041, %v574
        %v1043 = vpop.permute.xlu0 %1042
        %1045 = vset.pattern.permute.xlu0 67
        %1046 = vperm.xlu0 %1045, %v576
        %v1047 = vpop.permute.xlu0 %1046
        %1049 = vset.pattern.permute.xlu0 67
        %1050 = vperm.xlu0 %1049, %v578
        %v1051 = vpop.permute.xlu0 %1050
        %1053 = vset.pattern.permute.xlu0 67
        %1054 = vperm.xlu0 %1053, %v580
        %v1055 = vpop.permute.xlu0 %1054
        %1057 = vset.pattern.permute.xlu0 67
        %1058 = vperm.xlu0 %1057, %v582
        %v1059 = vpop.permute.xlu0 %1058
        %1061 = vset.pattern.permute.xlu0 67
        %1062 = vperm.xlu0 %1061, %v584
        %v1063 = vpop.permute.xlu0 %1062
        %1065 = vset.pattern.permute.xlu0 67
        %1066 = vperm.xlu0 %1065, %v586
        %v1067 = vpop.permute.xlu0 %1066
        %1069 = vset.pattern.permute.xlu0 67
        %1070 = vperm.xlu0 %1069, %v588
        %v1071 = vpop.permute.xlu0 %1070
        %1073 = vset.pattern.permute.xlu0 67
        %1074 = vperm.xlu0 %1073, %v590
        %v1075 = vpop.permute.xlu0 %1074
        %1077 = vset.pattern.permute.xlu0 67
        %1078 = vperm.xlu0 %1077, %v592
        %v1079 = vpop.permute.xlu0 %1078
        %1081 = vset.pattern.permute.xlu0 67
        %1082 = vperm.xlu0 %1081, %v594
        %v1083 = vpop.permute.xlu0 %1082
        %1085 = vset.pattern.permute.xlu0 67
        %1086 = vperm.xlu0 %1085, %v596
        %v1087 = vpop.permute.xlu0 %1086
        %1089 = vset.pattern.permute.xlu0 67
        %1090 = vperm.xlu0 %1089, %v598
        %v1091 = vpop.permute.xlu0 %1090
        %1093 = vset.pattern.permute.xlu0 67
        %1094 = vperm.xlu0 %1093, %v600
        %v1095 = vpop.permute.xlu0 %1094
        %v1097 = vmul.f32 %v281, %v1035
        %v1098 = vmul.f32 %v286, %v1039
        %v1099 = vmul.f32 %v291, %v1043
        %v1100 = vmul.f32 %v296, %v1047
        %v1101 = vmul.f32 %v301, %v1051
        %v1102 = vmul.f32 %v306, %v1055
        %v1103 = vmul.f32 %v311, %v1059
        %v1104 = vmul.f32 %v316, %v1063
        %v1105 = vmul.f32 %v321, %v1067
        %v1106 = vmul.f32 %v326, %v1071
        %v1107 = vmul.f32 %v331, %v1075
        %v1108 = vmul.f32 %v336, %v1079
        %v1109 = vmul.f32 %v341, %v1083
        %v1110 = vmul.f32 %v346, %v1087
        %v1111 = vmul.f32 %v351, %v1091
        %v1112 = vmul.f32 %v356, %v1095
        %1129 = vrot.lane.b32.xlu0 %v1097, 80
        %v1130 = vpop.permute.xlu0 %1129
        %1131 = vrot.lane.b32.xlu0 %v1098, 80
        %v1132 = vpop.permute.xlu0 %1131
        %1133 = vrot.lane.b32.xlu0 %v1099, 80
        %v1134 = vpop.permute.xlu0 %1133
        %1135 = vrot.lane.b32.xlu0 %v1100, 80
        %v1136 = vpop.permute.xlu0 %1135
        %1137 = vrot.lane.b32.xlu0 %v1101, 80
        %v1138 = vpop.permute.xlu0 %1137
        %1139 = vrot.lane.b32.xlu0 %v1102, 80
        %v1140 = vpop.permute.xlu0 %1139
        %1141 = vrot.lane.b32.xlu0 %v1103, 80
        %v1142 = vpop.permute.xlu0 %1141
        %1143 = vrot.lane.b32.xlu0 %v1104, 80
        %v1144 = vpop.permute.xlu0 %1143
        %1145 = vrot.lane.b32.xlu0 %v1105, 80
        %v1146 = vpop.permute.xlu0 %1145
        %1147 = vrot.lane.b32.xlu0 %v1106, 80
        %v1148 = vpop.permute.xlu0 %1147
        %1149 = vrot.lane.b32.xlu0 %v1107, 80
        %v1150 = vpop.permute.xlu0 %1149
        %1151 = vrot.lane.b32.xlu0 %v1108, 80
        %v1152 = vpop.permute.xlu0 %1151
        %1153 = vrot.lane.b32.xlu0 %v1109, 80
        %v1154 = vpop.permute.xlu0 %1153
        %1155 = vrot.lane.b32.xlu0 %v1110, 80
        %v1156 = vpop.permute.xlu0 %1155
        %1157 = vrot.lane.b32.xlu0 %v1111, 80
        %v1158 = vpop.permute.xlu0 %1157
        %1159 = vrot.lane.b32.xlu0 %v1112, 80
        %v1160 = vpop.permute.xlu0 %1159
        %v1177 = vadd.f32 %v1017, %v1130
        %v1178 = vadd.f32 %v1018, %v1132
        %v1179 = vadd.f32 %v1019, %v1134
        %v1180 = vadd.f32 %v1020, %v1136
        %v1181 = vadd.f32 %v1021, %v1138
        %v1182 = vadd.f32 %v1022, %v1140
        %v1183 = vadd.f32 %v1023, %v1142
        %v1184 = vadd.f32 %v1024, %v1144
        %v1185 = vadd.f32 %v1025, %v1146
        %v1186 = vadd.f32 %v1026, %v1148
        %v1187 = vadd.f32 %v1027, %v1150
        %v1188 = vadd.f32 %v1028, %v1152
        %v1189 = vadd.f32 %v1029, %v1154
        %v1190 = vadd.f32 %v1030, %v1156
        %v1191 = vadd.f32 %v1031, %v1158
        %v1192 = vadd.f32 %v1032, %v1160
        %vm1193 = vcmask 589344
        %v1194 = vsel %vm1193, %v281, -inf
        %1195 = vmax.xlane.f32.xlu0 %v1194
        %v1196 = vpop.xlane.xlu0 %1195
        %v1197 = vsel %vm1193, %v286, -inf
        %1198 = vmax.xlane.f32.xlu0 %v1197
        %v1199 = vpop.xlane.xlu0 %1198
        %v1200 = vsel %vm1193, %v291, -inf
        %1201 = vmax.xlane.f32.xlu0 %v1200
        %v1202 = vpop.xlane.xlu0 %1201
        %v1203 = vsel %vm1193, %v296, -inf
        %1204 = vmax.xlane.f32.xlu0 %v1203
        %v1205 = vpop.xlane.xlu0 %1204
        %v1206 = vsel %vm1193, %v301, -inf
        %1207 = vmax.xlane.f32.xlu0 %v1206
        %v1208 = vpop.xlane.xlu0 %1207
        %v1209 = vsel %vm1193, %v306, -inf
        %1210 = vmax.xlane.f32.xlu0 %v1209
        %v1211 = vpop.xlane.xlu0 %1210
        %v1212 = vsel %vm1193, %v311, -inf
        %1213 = vmax.xlane.f32.xlu0 %v1212
        %v1214 = vpop.xlane.xlu0 %1213
        %v1215 = vsel %vm1193, %v316, -inf
        %1216 = vmax.xlane.f32.xlu0 %v1215
        %v1217 = vpop.xlane.xlu0 %1216
        %v1218 = vsel %vm1193, %v321, -inf
        %1219 = vmax.xlane.f32.xlu0 %v1218
        %v1220 = vpop.xlane.xlu0 %1219
        %v1221 = vsel %vm1193, %v326, -inf
        %1222 = vmax.xlane.f32.xlu0 %v1221
        %v1223 = vpop.xlane.xlu0 %1222
        %v1224 = vsel %vm1193, %v331, -inf
        %1225 = vmax.xlane.f32.xlu0 %v1224
        %v1226 = vpop.xlane.xlu0 %1225
        %v1227 = vsel %vm1193, %v336, -inf
        %1228 = vmax.xlane.f32.xlu0 %v1227
        %v1229 = vpop.xlane.xlu0 %1228
        %v1230 = vsel %vm1193, %v341, -inf
        %1231 = vmax.xlane.f32.xlu0 %v1230
        %v1232 = vpop.xlane.xlu0 %1231
        %v1233 = vsel %vm1193, %v346, -inf
        %1234 = vmax.xlane.f32.xlu0 %v1233
        %v1235 = vpop.xlane.xlu0 %1234
        %v1236 = vsel %vm1193, %v351, -inf
        %1237 = vmax.xlane.f32.xlu0 %v1236
        %v1238 = vpop.xlane.xlu0 %1237
        %v1239 = vsel %vm1193, %v356, -inf
        %1240 = vmax.xlane.f32.xlu0 %v1239
        %v1241 = vpop.xlane.xlu0 %1240
        %v1242 = vsub.f32 %v281, %v1196
        %v1243 = vsub.f32 %v286, %v1199
        %v1244 = vsub.f32 %v291, %v1202
        %v1245 = vsub.f32 %v296, %v1205
        %v1246 = vsub.f32 %v301, %v1208
        %v1247 = vsub.f32 %v306, %v1211
        %v1248 = vsub.f32 %v311, %v1214
        %v1249 = vsub.f32 %v316, %v1217
        %v1250 = vsub.f32 %v321, %v1220
        %v1251 = vsub.f32 %v326, %v1223
        %v1252 = vsub.f32 %v331, %v1226
        %v1253 = vsub.f32 %v336, %v1229
        %v1254 = vsub.f32 %v341, %v1232
        %v1255 = vsub.f32 %v346, %v1235
        %v1256 = vsub.f32 %v351, %v1238
        %v1257 = vsub.f32 %v356, %v1241
        %v1258 = vmul.f32 %v1242, 1.442695
        %v1259 = vpow.pop %v1258
        %v1260 = vmul.f32 %v1243, 1.442695
        %v1261 = vpow.pop %v1260
        %v1262 = vmul.f32 %v1244, 1.442695
        %v1263 = vpow.pop %v1262
        %v1264 = vmul.f32 %v1245, 1.442695
        %v1265 = vpow.pop %v1264
        %v1266 = vmul.f32 %v1246, 1.442695
        %v1267 = vpow.pop %v1266
        %v1268 = vmul.f32 %v1247, 1.442695
        %v1269 = vpow.pop %v1268
        %v1270 = vmul.f32 %v1248, 1.442695
        %v1271 = vpow.pop %v1270
        %v1272 = vmul.f32 %v1249, 1.442695
        %v1273 = vpow.pop %v1272
        %v1274 = vmul.f32 %v1250, 1.442695
        %v1275 = vpow.pop %v1274
        %v1276 = vmul.f32 %v1251, 1.442695
        %v1277 = vpow.pop %v1276
        %v1278 = vmul.f32 %v1252, 1.442695
        %v1279 = vpow.pop %v1278
        %v1280 = vmul.f32 %v1253, 1.442695
        %v1281 = vpow.pop %v1280
        %v1282 = vmul.f32 %v1254, 1.442695
        %v1283 = vpow.pop %v1282
        %v1284 = vmul.f32 %v1255, 1.442695
        %v1285 = vpow.pop %v1284
        %v1286 = vmul.f32 %v1256, 1.442695
        %v1287 = vpow.pop %v1286
        %v1288 = vmul.f32 %v1257, 1.442695
        %v1289 = vpow.pop %v1288
        %1306 = vrot.lane.b32.xlu0 %v1259, 60
        %v1307 = vpop.permute.xlu0 %1306
        %1308 = vrot.lane.b32.xlu0 %v1261, 60
        %v1309 = vpop.permute.xlu0 %1308
        %1310 = vrot.lane.b32.xlu0 %v1263, 60
        %v1311 = vpop.permute.xlu0 %1310
        %1312 = vrot.lane.b32.xlu0 %v1265, 60
        %v1313 = vpop.permute.xlu0 %1312
        %1314 = vrot.lane.b32.xlu0 %v1267, 60
        %v1315 = vpop.permute.xlu0 %1314
        %1316 = vrot.lane.b32.xlu0 %v1269, 60
        %v1317 = vpop.permute.xlu0 %1316
        %1318 = vrot.lane.b32.xlu0 %v1271, 60
        %v1319 = vpop.permute.xlu0 %1318
        %1320 = vrot.lane.b32.xlu0 %v1273, 60
        %v1321 = vpop.permute.xlu0 %1320
        %1322 = vrot.lane.b32.xlu0 %v1275, 60
        %v1323 = vpop.permute.xlu0 %1322
        %1324 = vrot.lane.b32.xlu0 %v1277, 60
        %v1325 = vpop.permute.xlu0 %1324
        %1326 = vrot.lane.b32.xlu0 %v1279, 60
        %v1327 = vpop.permute.xlu0 %1326
        %1328 = vrot.lane.b32.xlu0 %v1281, 60
        %v1329 = vpop.permute.xlu0 %1328
        %1330 = vrot.lane.b32.xlu0 %v1283, 60
        %v1331 = vpop.permute.xlu0 %1330
        %1332 = vrot.lane.b32.xlu0 %v1285, 60
        %v1333 = vpop.permute.xlu0 %1332
        %1334 = vrot.lane.b32.xlu0 %v1287, 60
        %v1335 = vpop.permute.xlu0 %1334
        %1336 = vrot.lane.b32.xlu0 %v1289, 60
        %v1337 = vpop.permute.xlu0 %1336
        %v1354 = vsel %vm520, %v1307, 0.0
        %1355 = vadd.xlane.f32.xlu0 %v1354
        %v1356 = vpop.xlane.xlu0 %1355
        %v1357 = vsel %vm520, %v1309, 0.0
        %1358 = vadd.xlane.f32.xlu0 %v1357
        %v1359 = vpop.xlane.xlu0 %1358
        %v1360 = vsel %vm520, %v1311, 0.0
        %1361 = vadd.xlane.f32.xlu0 %v1360
        %v1362 = vpop.xlane.xlu0 %1361
        %v1363 = vsel %vm520, %v1313, 0.0
        %1364 = vadd.xlane.f32.xlu0 %v1363
        %v1365 = vpop.xlane.xlu0 %1364
        %v1366 = vsel %vm520, %v1315, 0.0
        %1367 = vadd.xlane.f32.xlu0 %v1366
        %v1368 = vpop.xlane.xlu0 %1367
        %v1369 = vsel %vm520, %v1317, 0.0
        %1370 = vadd.xlane.f32.xlu0 %v1369
        %v1371 = vpop.xlane.xlu0 %1370
        %v1372 = vsel %vm520, %v1319, 0.0
        %1373 = vadd.xlane.f32.xlu0 %v1372
        %v1374 = vpop.xlane.xlu0 %1373
        %v1375 = vsel %vm520, %v1321, 0.0
        %1376 = vadd.xlane.f32.xlu0 %v1375
        %v1377 = vpop.xlane.xlu0 %1376
        %v1378 = vsel %vm520, %v1323, 0.0
        %1379 = vadd.xlane.f32.xlu0 %v1378
        %v1380 = vpop.xlane.xlu0 %1379
        %v1381 = vsel %vm520, %v1325, 0.0
        %1382 = vadd.xlane.f32.xlu0 %v1381
        %v1383 = vpop.xlane.xlu0 %1382
        %v1384 = vsel %vm520, %v1327, 0.0
        %1385 = vadd.xlane.f32.xlu0 %v1384
        %v1386 = vpop.xlane.xlu0 %1385
        %v1387 = vsel %vm520, %v1329, 0.0
        %1388 = vadd.xlane.f32.xlu0 %v1387
        %v1389 = vpop.xlane.xlu0 %1388
        %v1390 = vsel %vm520, %v1331, 0.0
        %1391 = vadd.xlane.f32.xlu0 %v1390
        %v1392 = vpop.xlane.xlu0 %1391
        %v1393 = vsel %vm520, %v1333, 0.0
        %1394 = vadd.xlane.f32.xlu0 %v1393
        %v1395 = vpop.xlane.xlu0 %1394
        %v1396 = vsel %vm520, %v1335, 0.0
        %1397 = vadd.xlane.f32.xlu0 %v1396
        %v1398 = vpop.xlane.xlu0 %1397
        %v1399 = vsel %vm520, %v1337, 0.0
        %1400 = vadd.xlane.f32.xlu0 %v1399
        %v1401 = vpop.xlane.xlu0 %1400
        %v1402 = vrcp.pop %v1356
        %v1403 = vmul.f32 %v1259, %v1402
        %v1404 = vrcp.pop %v1359
        %v1405 = vmul.f32 %v1261, %v1404
        %v1406 = vrcp.pop %v1362
        %v1407 = vmul.f32 %v1263, %v1406
        %v1408 = vrcp.pop %v1365
        %v1409 = vmul.f32 %v1265, %v1408
        %v1410 = vrcp.pop %v1368
        %v1411 = vmul.f32 %v1267, %v1410
        %v1412 = vrcp.pop %v1371
        %v1413 = vmul.f32 %v1269, %v1412
        %v1414 = vrcp.pop %v1374
        %v1415 = vmul.f32 %v1271, %v1414
        %v1416 = vrcp.pop %v1377
        %v1417 = vmul.f32 %v1273, %v1416
        %v1418 = vrcp.pop %v1380
        %v1419 = vmul.f32 %v1275, %v1418
        %v1420 = vrcp.pop %v1383
        %v1421 = vmul.f32 %v1277, %v1420
        %v1422 = vrcp.pop %v1386
        %v1423 = vmul.f32 %v1279, %v1422
        %v1424 = vrcp.pop %v1389
        %v1425 = vmul.f32 %v1281, %v1424
        %v1426 = vrcp.pop %v1392
        %v1427 = vmul.f32 %v1283, %v1426
        %v1428 = vrcp.pop %v1395
        %v1429 = vmul.f32 %v1285, %v1428
        %v1430 = vrcp.pop %v1398
        %v1431 = vmul.f32 %v1287, %v1430
        %v1432 = vrcp.pop %v1401
        %v1433 = vmul.f32 %v1289, %v1432
        %1435 = vset.pattern.permute.xlu0 68
        %1436 = vperm.xlu0 %1435, %v1403
        %v1437 = vpop.permute.xlu0 %1436
        %1440 = vset.pattern.permute.xlu0 68
        %1441 = vperm.xlu0 %1440, %v1405
        %v1442 = vpop.permute.xlu0 %1441
        %1445 = vset.pattern.permute.xlu0 68
        %1446 = vperm.xlu0 %1445, %v1407
        %v1447 = vpop.permute.xlu0 %1446
        %1450 = vset.pattern.permute.xlu0 68
        %1451 = vperm.xlu0 %1450, %v1409
        %v1452 = vpop.permute.xlu0 %1451
        %1455 = vset.pattern.permute.xlu0 68
        %1456 = vperm.xlu0 %1455, %v1411
        %v1457 = vpop.permute.xlu0 %1456
        %1460 = vset.pattern.permute.xlu0 68
        %1461 = vperm.xlu0 %1460, %v1413
        %v1462 = vpop.permute.xlu0 %1461
        %1465 = vset.pattern.permute.xlu0 68
        %1466 = vperm.xlu0 %1465, %v1415
        %v1467 = vpop.permute.xlu0 %1466
        %1470 = vset.pattern.permute.xlu0 68
        %1471 = vperm.xlu0 %1470, %v1417
        %v1472 = vpop.permute.xlu0 %1471
        %1475 = vset.pattern.permute.xlu0 68
        %1476 = vperm.xlu0 %1475, %v1419
        %v1477 = vpop.permute.xlu0 %1476
        %1480 = vset.pattern.permute.xlu0 68
        %1481 = vperm.xlu0 %1480, %v1421
        %v1482 = vpop.permute.xlu0 %1481
        %1485 = vset.pattern.permute.xlu0 68
        %1486 = vperm.xlu0 %1485, %v1423
        %v1487 = vpop.permute.xlu0 %1486
        %1490 = vset.pattern.permute.xlu0 68
        %1491 = vperm.xlu0 %1490, %v1425
        %v1492 = vpop.permute.xlu0 %1491
        %1495 = vset.pattern.permute.xlu0 68
        %1496 = vperm.xlu0 %1495, %v1427
        %v1497 = vpop.permute.xlu0 %1496
        %1500 = vset.pattern.permute.xlu0 68
        %1501 = vperm.xlu0 %1500, %v1429
        %v1502 = vpop.permute.xlu0 %1501
        %1505 = vset.pattern.permute.xlu0 68
        %1506 = vperm.xlu0 %1505, %v1431
        %v1507 = vpop.permute.xlu0 %1506
        %1510 = vset.pattern.permute.xlu0 68
        %1511 = vperm.xlu0 %1510, %v1433
        %v1512 = vpop.permute.xlu0 %1511
        %v1514 = vmul.f32 %v281, %v1437
        %v1515 = vmul.f32 %v286, %v1442
        %v1516 = vmul.f32 %v291, %v1447
        %v1517 = vmul.f32 %v296, %v1452
        %v1518 = vmul.f32 %v301, %v1457
        %v1519 = vmul.f32 %v306, %v1462
        %v1520 = vmul.f32 %v311, %v1467
        %v1521 = vmul.f32 %v316, %v1472
        %v1522 = vmul.f32 %v321, %v1477
        %v1523 = vmul.f32 %v326, %v1482
        %v1524 = vmul.f32 %v331, %v1487
        %v1525 = vmul.f32 %v336, %v1492
        %v1526 = vmul.f32 %v341, %v1497
        %v1527 = vmul.f32 %v346, %v1502
        %v1528 = vmul.f32 %v351, %v1507
        %v1529 = vmul.f32 %v356, %v1512
        %v1530 = vadd.f32 %v1514, 0.0
        %v1531 = vadd.f32 %v1515, 0.0
        %v1532 = vadd.f32 %v1516, 0.0
        %v1533 = vadd.f32 %v1517, 0.0
        %v1534 = vadd.f32 %v1518, 0.0
        %v1535 = vadd.f32 %v1519, 0.0
        %v1536 = vadd.f32 %v1520, 0.0
        %v1537 = vadd.f32 %v1521, 0.0
        %v1538 = vadd.f32 %v1522, 0.0
        %v1539 = vadd.f32 %v1523, 0.0
        %v1540 = vadd.f32 %v1524, 0.0
        %v1541 = vadd.f32 %v1525, 0.0
        %v1542 = vadd.f32 %v1526, 0.0
        %v1543 = vadd.f32 %v1527, 0.0
        %v1544 = vadd.f32 %v1528, 0.0
        %v1545 = vadd.f32 %v1529, 0.0
        %1546 = vset.pattern.permute.xlu0 69
        %1547 = vperm.xlu0 %1546, %v1403
        %v1548 = vpop.permute.xlu0 %1547
        %1550 = vset.pattern.permute.xlu0 69
        %1551 = vperm.xlu0 %1550, %v1405
        %v1552 = vpop.permute.xlu0 %1551
        %1554 = vset.pattern.permute.xlu0 69
        %1555 = vperm.xlu0 %1554, %v1407
        %v1556 = vpop.permute.xlu0 %1555
        %1558 = vset.pattern.permute.xlu0 69
        %1559 = vperm.xlu0 %1558, %v1409
        %v1560 = vpop.permute.xlu0 %1559
        %1562 = vset.pattern.permute.xlu0 69
        %1563 = vperm.xlu0 %1562, %v1411
        %v1564 = vpop.permute.xlu0 %1563
        %1566 = vset.pattern.permute.xlu0 69
        %1567 = vperm.xlu0 %1566, %v1413
        %v1568 = vpop.permute.xlu0 %1567
        %1570 = vset.pattern.permute.xlu0 69
        %1571 = vperm.xlu0 %1570, %v1415
        %v1572 = vpop.permute.xlu0 %1571
        %1574 = vset.pattern.permute.xlu0 69
        %1575 = vperm.xlu0 %1574, %v1417
        %v1576 = vpop.permute.xlu0 %1575
        %1578 = vset.pattern.permute.xlu0 69
        %1579 = vperm.xlu0 %1578, %v1419
        %v1580 = vpop.permute.xlu0 %1579
        %1582 = vset.pattern.permute.xlu0 69
        %1583 = vperm.xlu0 %1582, %v1421
        %v1584 = vpop.permute.xlu0 %1583
        %1586 = vset.pattern.permute.xlu0 69
        %1587 = vperm.xlu0 %1586, %v1423
        %v1588 = vpop.permute.xlu0 %1587
        %1590 = vset.pattern.permute.xlu0 69
        %1591 = vperm.xlu0 %1590, %v1425
        %v1592 = vpop.permute.xlu0 %1591
        %1594 = vset.pattern.permute.xlu0 69
        %1595 = vperm.xlu0 %1594, %v1427
        %v1596 = vpop.permute.xlu0 %1595
        %1598 = vset.pattern.permute.xlu0 69
        %1599 = vperm.xlu0 %1598, %v1429
        %v1600 = vpop.permute.xlu0 %1599
        %1602 = vset.pattern.permute.xlu0 69
        %1603 = vperm.xlu0 %1602, %v1431
        %v1604 = vpop.permute.xlu0 %1603
        %1606 = vset.pattern.permute.xlu0 69
        %1607 = vperm.xlu0 %1606, %v1433
        %v1608 = vpop.permute.xlu0 %1607
        %v1610 = vmul.f32 %v281, %v1548
        %v1611 = vmul.f32 %v286, %v1552
        %v1612 = vmul.f32 %v291, %v1556
        %v1613 = vmul.f32 %v296, %v1560
        %v1614 = vmul.f32 %v301, %v1564
        %v1615 = vmul.f32 %v306, %v1568
        %v1616 = vmul.f32 %v311, %v1572
        %v1617 = vmul.f32 %v316, %v1576
        %v1618 = vmul.f32 %v321, %v1580
        %v1619 = vmul.f32 %v326, %v1584
        %v1620 = vmul.f32 %v331, %v1588
        %v1621 = vmul.f32 %v336, %v1592
        %v1622 = vmul.f32 %v341, %v1596
        %v1623 = vmul.f32 %v346, %v1600
        %v1624 = vmul.f32 %v351, %v1604
        %v1625 = vmul.f32 %v356, %v1608
        %1642 = vrot.lane.b32.xlu0 %v1610, 112
        %v1643 = vpop.permute.xlu0 %1642
        %1644 = vrot.lane.b32.xlu0 %v1611, 112
        %v1645 = vpop.permute.xlu0 %1644
        %1646 = vrot.lane.b32.xlu0 %v1612, 112
        %v1647 = vpop.permute.xlu0 %1646
        %1648 = vrot.lane.b32.xlu0 %v1613, 112
        %v1649 = vpop.permute.xlu0 %1648
        %1650 = vrot.lane.b32.xlu0 %v1614, 112
        %v1651 = vpop.permute.xlu0 %1650
        %1652 = vrot.lane.b32.xlu0 %v1615, 112
        %v1653 = vpop.permute.xlu0 %1652
        %1654 = vrot.lane.b32.xlu0 %v1616, 112
        %v1655 = vpop.permute.xlu0 %1654
        %1656 = vrot.lane.b32.xlu0 %v1617, 112
        %v1657 = vpop.permute.xlu0 %1656
        %1658 = vrot.lane.b32.xlu0 %v1618, 112
        %v1659 = vpop.permute.xlu0 %1658
        %1660 = vrot.lane.b32.xlu0 %v1619, 112
        %v1661 = vpop.permute.xlu0 %1660
        %1662 = vrot.lane.b32.xlu0 %v1620, 112
        %v1663 = vpop.permute.xlu0 %1662
        %1664 = vrot.lane.b32.xlu0 %v1621, 112
        %v1665 = vpop.permute.xlu0 %1664
        %1666 = vrot.lane.b32.xlu0 %v1622, 112
        %v1667 = vpop.permute.xlu0 %1666
        %1668 = vrot.lane.b32.xlu0 %v1623, 112
        %v1669 = vpop.permute.xlu0 %1668
        %1670 = vrot.lane.b32.xlu0 %v1624, 112
        %v1671 = vpop.permute.xlu0 %1670
        %1672 = vrot.lane.b32.xlu0 %v1625, 112
        %v1673 = vpop.permute.xlu0 %1672
        %v1690 = vadd.f32 %v1530, %v1643
        %v1691 = vadd.f32 %v1531, %v1645
        %v1692 = vadd.f32 %v1532, %v1647
        %v1693 = vadd.f32 %v1533, %v1649
        %v1694 = vadd.f32 %v1534, %v1651
        %v1695 = vadd.f32 %v1535, %v1653
        %v1696 = vadd.f32 %v1536, %v1655
        %v1697 = vadd.f32 %v1537, %v1657
        %v1698 = vadd.f32 %v1538, %v1659
        %v1699 = vadd.f32 %v1539, %v1661
        %v1700 = vadd.f32 %v1540, %v1663
        %v1701 = vadd.f32 %v1541, %v1665
        %v1702 = vadd.f32 %v1542, %v1667
        %v1703 = vadd.f32 %v1543, %v1669
        %v1704 = vadd.f32 %v1544, %v1671
        %v1705 = vadd.f32 %v1545, %v1673
        %1706 = vset.pattern.permute.xlu0 70
        %1707 = vperm.xlu0 %1706, %v1403
        %v1708 = vpop.permute.xlu0 %1707
        %1710 = vset.pattern.permute.xlu0 70
        %1711 = vperm.xlu0 %1710, %v1405
        %v1712 = vpop.permute.xlu0 %1711
        %1714 = vset.pattern.permute.xlu0 70
        %1715 = vperm.xlu0 %1714, %v1407
        %v1716 = vpop.permute.xlu0 %1715
        %1718 = vset.pattern.permute.xlu0 70
        %1719 = vperm.xlu0 %1718, %v1409
        %v1720 = vpop.permute.xlu0 %1719
        %1722 = vset.pattern.permute.xlu0 70
        %1723 = vperm.xlu0 %1722, %v1411
        %v1724 = vpop.permute.xlu0 %1723
        %1726 = vset.pattern.permute.xlu0 70
        %1727 = vperm.xlu0 %1726, %v1413
        %v1728 = vpop.permute.xlu0 %1727
        %1730 = vset.pattern.permute.xlu0 70
        %1731 = vperm.xlu0 %1730, %v1415
        %v1732 = vpop.permute.xlu0 %1731
        %1734 = vset.pattern.permute.xlu0 70
        %1735 = vperm.xlu0 %1734, %v1417
        %v1736 = vpop.permute.xlu0 %1735
        %1738 = vset.pattern.permute.xlu0 70
        %1739 = vperm.xlu0 %1738, %v1419
        %v1740 = vpop.permute.xlu0 %1739
        %1742 = vset.pattern.permute.xlu0 70
        %1743 = vperm.xlu0 %1742, %v1421
        %v1744 = vpop.permute.xlu0 %1743
        %1746 = vset.pattern.permute.xlu0 70
        %1747 = vperm.xlu0 %1746, %v1423
        %v1748 = vpop.permute.xlu0 %1747
        %1750 = vset.pattern.permute.xlu0 70
        %1751 = vperm.xlu0 %1750, %v1425
        %v1752 = vpop.permute.xlu0 %1751
        %1754 = vset.pattern.permute.xlu0 70
        %1755 = vperm.xlu0 %1754, %v1427
        %v1756 = vpop.permute.xlu0 %1755
        %1758 = vset.pattern.permute.xlu0 70
        %1759 = vperm.xlu0 %1758, %v1429
        %v1760 = vpop.permute.xlu0 %1759
        %1762 = vset.pattern.permute.xlu0 70
        %1763 = vperm.xlu0 %1762, %v1431
        %v1764 = vpop.permute.xlu0 %1763
        %1766 = vset.pattern.permute.xlu0 70
        %1767 = vperm.xlu0 %1766, %v1433
        %v1768 = vpop.permute.xlu0 %1767
        %v1770 = vmul.f32 %v281, %v1708
        %v1771 = vmul.f32 %v286, %v1712
        %v1772 = vmul.f32 %v291, %v1716
        %v1773 = vmul.f32 %v296, %v1720
        %v1774 = vmul.f32 %v301, %v1724
        %v1775 = vmul.f32 %v306, %v1728
        %v1776 = vmul.f32 %v311, %v1732
        %v1777 = vmul.f32 %v316, %v1736
        %v1778 = vmul.f32 %v321, %v1740
        %v1779 = vmul.f32 %v326, %v1744
        %v1780 = vmul.f32 %v331, %v1748
        %v1781 = vmul.f32 %v336, %v1752
        %v1782 = vmul.f32 %v341, %v1756
        %v1783 = vmul.f32 %v346, %v1760
        %v1784 = vmul.f32 %v351, %v1764
        %v1785 = vmul.f32 %v356, %v1768
        %1802 = vrot.lane.b32.xlu0 %v1770, 96
        %v1803 = vpop.permute.xlu0 %1802
        %1804 = vrot.lane.b32.xlu0 %v1771, 96
        %v1805 = vpop.permute.xlu0 %1804
        %1806 = vrot.lane.b32.xlu0 %v1772, 96
        %v1807 = vpop.permute.xlu0 %1806
        %1808 = vrot.lane.b32.xlu0 %v1773, 96
        %v1809 = vpop.permute.xlu0 %1808
        %1810 = vrot.lane.b32.xlu0 %v1774, 96
        %v1811 = vpop.permute.xlu0 %1810
        %1812 = vrot.lane.b32.xlu0 %v1775, 96
        %v1813 = vpop.permute.xlu0 %1812
        %1814 = vrot.lane.b32.xlu0 %v1776, 96
        %v1815 = vpop.permute.xlu0 %1814
        %1816 = vrot.lane.b32.xlu0 %v1777, 96
        %v1817 = vpop.permute.xlu0 %1816
        %1818 = vrot.lane.b32.xlu0 %v1778, 96
        %v1819 = vpop.permute.xlu0 %1818
        %1820 = vrot.lane.b32.xlu0 %v1779, 96
        %v1821 = vpop.permute.xlu0 %1820
        %1822 = vrot.lane.b32.xlu0 %v1780, 96
        %v1823 = vpop.permute.xlu0 %1822
        %1824 = vrot.lane.b32.xlu0 %v1781, 96
        %v1825 = vpop.permute.xlu0 %1824
        %1826 = vrot.lane.b32.xlu0 %v1782, 96
        %v1827 = vpop.permute.xlu0 %1826
        %1828 = vrot.lane.b32.xlu0 %v1783, 96
        %v1829 = vpop.permute.xlu0 %1828
        %1830 = vrot.lane.b32.xlu0 %v1784, 96
        %v1831 = vpop.permute.xlu0 %1830
        %1832 = vrot.lane.b32.xlu0 %v1785, 96
        %v1833 = vpop.permute.xlu0 %1832
        %v1850 = vadd.f32 %v1690, %v1803
        %v1851 = vadd.f32 %v1691, %v1805
        %v1852 = vadd.f32 %v1692, %v1807
        %v1853 = vadd.f32 %v1693, %v1809
        %v1854 = vadd.f32 %v1694, %v1811
        %v1855 = vadd.f32 %v1695, %v1813
        %v1856 = vadd.f32 %v1696, %v1815
        %v1857 = vadd.f32 %v1697, %v1817
        %v1858 = vadd.f32 %v1698, %v1819
        %v1859 = vadd.f32 %v1699, %v1821
        %v1860 = vadd.f32 %v1700, %v1823
        %v1861 = vadd.f32 %v1701, %v1825
        %v1862 = vadd.f32 %v1702, %v1827
        %v1863 = vadd.f32 %v1703, %v1829
        %v1864 = vadd.f32 %v1704, %v1831
        %v1865 = vadd.f32 %v1705, %v1833
        %1866 = vset.pattern.permute.xlu0 71
        %1867 = vperm.xlu0 %1866, %v1403
        %v1868 = vpop.permute.xlu0 %1867
        %1870 = vset.pattern.permute.xlu0 71
        %1871 = vperm.xlu0 %1870, %v1405
        %v1872 = vpop.permute.xlu0 %1871
        %1874 = vset.pattern.permute.xlu0 71
        %1875 = vperm.xlu0 %1874, %v1407
        %v1876 = vpop.permute.xlu0 %1875
        %1878 = vset.pattern.permute.xlu0 71
        %1879 = vperm.xlu0 %1878, %v1409
        %v1880 = vpop.permute.xlu0 %1879
        %1882 = vset.pattern.permute.xlu0 71
        %1883 = vperm.xlu0 %1882, %v1411
        %v1884 = vpop.permute.xlu0 %1883
        %1886 = vset.pattern.permute.xlu0 71
        %1887 = vperm.xlu0 %1886, %v1413
        %v1888 = vpop.permute.xlu0 %1887
        %1890 = vset.pattern.permute.xlu0 71
        %1891 = vperm.xlu0 %1890, %v1415
        %v1892 = vpop.permute.xlu0 %1891
        %1894 = vset.pattern.permute.xlu0 71
        %1895 = vperm.xlu0 %1894, %v1417
        %v1896 = vpop.permute.xlu0 %1895
        %1898 = vset.pattern.permute.xlu0 71
        %1899 = vperm.xlu0 %1898, %v1419
        %v1900 = vpop.permute.xlu0 %1899
        %1902 = vset.pattern.permute.xlu0 71
        %1903 = vperm.xlu0 %1902, %v1421
        %v1904 = vpop.permute.xlu0 %1903
        %1906 = vset.pattern.permute.xlu0 71
        %1907 = vperm.xlu0 %1906, %v1423
        %v1908 = vpop.permute.xlu0 %1907
        %1910 = vset.pattern.permute.xlu0 71
        %1911 = vperm.xlu0 %1910, %v1425
        %v1912 = vpop.permute.xlu0 %1911
        %1914 = vset.pattern.permute.xlu0 71
        %1915 = vperm.xlu0 %1914, %v1427
        %v1916 = vpop.permute.xlu0 %1915
        %1918 = vset.pattern.permute.xlu0 71
        %1919 = vperm.xlu0 %1918, %v1429
        %v1920 = vpop.permute.xlu0 %1919
        %1922 = vset.pattern.permute.xlu0 71
        %1923 = vperm.xlu0 %1922, %v1431
        %v1924 = vpop.permute.xlu0 %1923
        %1926 = vset.pattern.permute.xlu0 71
        %1927 = vperm.xlu0 %1926, %v1433
        %v1928 = vpop.permute.xlu0 %1927
        %v1930 = vmul.f32 %v281, %v1868
        %v1931 = vmul.f32 %v286, %v1872
        %v1932 = vmul.f32 %v291, %v1876
        %v1933 = vmul.f32 %v296, %v1880
        %v1934 = vmul.f32 %v301, %v1884
        %v1935 = vmul.f32 %v306, %v1888
        %v1936 = vmul.f32 %v311, %v1892
        %v1937 = vmul.f32 %v316, %v1896
        %v1938 = vmul.f32 %v321, %v1900
        %v1939 = vmul.f32 %v326, %v1904
        %v1940 = vmul.f32 %v331, %v1908
        %v1941 = vmul.f32 %v336, %v1912
        %v1942 = vmul.f32 %v341, %v1916
        %v1943 = vmul.f32 %v346, %v1920
        %v1944 = vmul.f32 %v351, %v1924
        %v1945 = vmul.f32 %v356, %v1928
        %1962 = vrot.lane.b32.xlu0 %v1930, 80
        %v1963 = vpop.permute.xlu0 %1962
        %1964 = vrot.lane.b32.xlu0 %v1931, 80
        %v1965 = vpop.permute.xlu0 %1964
        %1966 = vrot.lane.b32.xlu0 %v1932, 80
        %v1967 = vpop.permute.xlu0 %1966
        %1968 = vrot.lane.b32.xlu0 %v1933, 80
        %v1969 = vpop.permute.xlu0 %1968
        %1970 = vrot.lane.b32.xlu0 %v1934, 80
        %v1971 = vpop.permute.xlu0 %1970
        %1972 = vrot.lane.b32.xlu0 %v1935, 80
        %v1973 = vpop.permute.xlu0 %1972
        %1974 = vrot.lane.b32.xlu0 %v1936, 80
        %v1975 = vpop.permute.xlu0 %1974
        %1976 = vrot.lane.b32.xlu0 %v1937, 80
        %v1977 = vpop.permute.xlu0 %1976
        %1978 = vrot.lane.b32.xlu0 %v1938, 80
        %v1979 = vpop.permute.xlu0 %1978
        %1980 = vrot.lane.b32.xlu0 %v1939, 80
        %v1981 = vpop.permute.xlu0 %1980
        %1982 = vrot.lane.b32.xlu0 %v1940, 80
        %v1983 = vpop.permute.xlu0 %1982
        %1984 = vrot.lane.b32.xlu0 %v1941, 80
        %v1985 = vpop.permute.xlu0 %1984
        %1986 = vrot.lane.b32.xlu0 %v1942, 80
        %v1987 = vpop.permute.xlu0 %1986
        %1988 = vrot.lane.b32.xlu0 %v1943, 80
        %v1989 = vpop.permute.xlu0 %1988
        %1990 = vrot.lane.b32.xlu0 %v1944, 80
        %v1991 = vpop.permute.xlu0 %1990
        %1992 = vrot.lane.b32.xlu0 %v1945, 80
        %v1993 = vpop.permute.xlu0 %1992
        %v2010 = vadd.f32 %v1850, %v1963
        %v2011 = vadd.f32 %v1851, %v1965
        %v2012 = vadd.f32 %v1852, %v1967
        %v2013 = vadd.f32 %v1853, %v1969
        %v2014 = vadd.f32 %v1854, %v1971
        %v2015 = vadd.f32 %v1855, %v1973
        %v2016 = vadd.f32 %v1856, %v1975
        %v2017 = vadd.f32 %v1857, %v1977
        %v2018 = vadd.f32 %v1858, %v1979
        %v2019 = vadd.f32 %v1859, %v1981
        %v2020 = vadd.f32 %v1860, %v1983
        %v2021 = vadd.f32 %v1861, %v1985
        %v2022 = vadd.f32 %v1862, %v1987
        %v2023 = vadd.f32 %v1863, %v1989
        %v2024 = vadd.f32 %v1864, %v1991
        %v2025 = vadd.f32 %v1865, %v1993
        %2042 = vrot.lane.b32.xlu0 %v2010, 16
        %v2043 = vpop.permute.xlu0 %2042
        %2044 = vrot.lane.b32.xlu0 %v2011, 16
        %v2045 = vpop.permute.xlu0 %2044
        %2046 = vrot.lane.b32.xlu0 %v2012, 16
        %v2047 = vpop.permute.xlu0 %2046
        %2048 = vrot.lane.b32.xlu0 %v2013, 16
        %v2049 = vpop.permute.xlu0 %2048
        %2050 = vrot.lane.b32.xlu0 %v2014, 16
        %v2051 = vpop.permute.xlu0 %2050
        %2052 = vrot.lane.b32.xlu0 %v2015, 16
        %v2053 = vpop.permute.xlu0 %2052
        %2054 = vrot.lane.b32.xlu0 %v2016, 16
        %v2055 = vpop.permute.xlu0 %2054
        %2056 = vrot.lane.b32.xlu0 %v2017, 16
        %v2057 = vpop.permute.xlu0 %2056
        %2058 = vrot.lane.b32.xlu0 %v2018, 16
        %v2059 = vpop.permute.xlu0 %2058
        %2060 = vrot.lane.b32.xlu0 %v2019, 16
        %v2061 = vpop.permute.xlu0 %2060
        %2062 = vrot.lane.b32.xlu0 %v2020, 16
        %v2063 = vpop.permute.xlu0 %2062
        %2064 = vrot.lane.b32.xlu0 %v2021, 16
        %v2065 = vpop.permute.xlu0 %2064
        %2066 = vrot.lane.b32.xlu0 %v2022, 16
        %v2067 = vpop.permute.xlu0 %2066
        %2068 = vrot.lane.b32.xlu0 %v2023, 16
        %v2069 = vpop.permute.xlu0 %2068
        %2070 = vrot.lane.b32.xlu0 %v2024, 16
        %v2071 = vpop.permute.xlu0 %2070
        %2072 = vrot.lane.b32.xlu0 %v2025, 16
        %v2073 = vpop.permute.xlu0 %2072
        %vm2090 = vcmask 130048
        %v2091 = vsel %vm2090, %v1177, %v2043
        %v2092 = vsel %vm2090, %v1178, %v2045
        %v2093 = vsel %vm2090, %v1179, %v2047
        %v2094 = vsel %vm2090, %v1180, %v2049
        %v2095 = vsel %vm2090, %v1181, %v2051
        %v2096 = vsel %vm2090, %v1182, %v2053
        %v2097 = vsel %vm2090, %v1183, %v2055
        %v2098 = vsel %vm2090, %v1184, %v2057
        %v2099 = vsel %vm2090, %v1185, %v2059
        %v2100 = vsel %vm2090, %v1186, %v2061
        %v2101 = vsel %vm2090, %v1187, %v2063
        %v2102 = vsel %vm2090, %v1188, %v2065
        %v2103 = vsel %vm2090, %v1189, %v2067
        %v2104 = vsel %vm2090, %v1190, %v2069
        %v2105 = vsel %vm2090, %v1191, %v2071
        %v2106 = vsel %vm2090, %v1192, %v2073
        %v2107 = vsel %vm165, %v2091, 0.0
        %v2108 = vsel %vm165, %v2092, 0.0
        %v2109 = vsel %vm165, %v2093, 0.0
        %v2110 = vsel %vm165, %v2094, 0.0
        %v2111 = vsel %vm165, %v2095, 0.0
        %v2112 = vsel %vm165, %v2096, 0.0
        %v2113 = vsel %vm165, %v2097, 0.0
        %v2114 = vsel %vm165, %v2098, 0.0
        %v2115 = vsel %vm165, %v2099, 0.0
        %v2116 = vsel %vm165, %v2100, 0.0
        %v2117 = vsel %vm165, %v2101, 0.0
        %v2118 = vsel %vm165, %v2102, 0.0
        %v2119 = vsel %vm165, %v2103, 0.0
        %v2120 = vsel %vm165, %v2104, 0.0
        %v2121 = vsel %vm165, %v2105, 0.0
        %v2122 = vsel %vm165, %v2106, 0.0
        %2123 = vst [vmem:[%s137] sm:$0xff] %v2107
        %2124 = vst [vmem:[%s137 + $0x8] sm:$0xff] %v2108
        %2125 = vst [vmem:[%s137 + $0x10] sm:$0xff] %v2109
        %2126 = vst [vmem:[%s137 + $0x18] sm:$0xff] %v2110
        %2127 = vst [vmem:[%s137 + $0x20] sm:$0xff] %v2111
        %2128 = vst [vmem:[%s137 + $0x28] sm:$0xff] %v2112
        %2129 = vst [vmem:[%s137 + $0x30] sm:$0xff] %v2113
        %2130 = vst [vmem:[%s137 + $0x38] sm:$0xff] %v2114
        %2131 = vst [vmem:[%s137 + $0x40] sm:$0xff] %v2115
        %2132 = vst [vmem:[%s137 + $0x48] sm:$0xff] %v2116
        %2133 = vst [vmem:[%s137 + $0x50] sm:$0xff] %v2117
        %2134 = vst [vmem:[%s137 + $0x58] sm:$0xff] %v2118
        %2135 = vst [vmem:[%s137 + $0x60] sm:$0xff] %v2119
        %2136 = vst [vmem:[%s137 + $0x68] sm:$0xff] %v2120
        %2137 = vst [vmem:[%s137 + $0x70] sm:$0xff] %v2121
        %2138 = vst [vmem:[%s137 + $0x78] sm:$0xff] %v2122
        %s2139 = sand.u32 %s71, 1
        %s2140 = scalar_lea.sflag [#allocation3], %s2139
        %s2141 = sand.u32 %s71, 1
        %s2142 = smul.addr %s2141, 128
        %s2143 = scalar_lea.vmem [#allocation2], %s2142
        // Predicated region
        $region29: #{tpu_custom_call.1} parent=27 // pred_check
          %p2144 = pneg %p81
        $region30: #{tpu_custom_call.1} parent=27 // pred_check_branch
          %2146 = sbr.rel (%p2144) target = $region32
        $region31: #{tpu_custom_call.1} parent=27 // pred_region
          %s2147 = smul.u32 16, %s16
          %s2149 = ssub.s32 2048, 2048
          %2150 = vsyncadd %s2140, %s2149
          %s2151 = smul.addr %s2147, 128
          %s2152 = scalar_lea.hbm %s2, %s2151
          %s2153 = sshll.u32 %s2143, 4
          %s2154 = int_to_ptr.vmem [resolvable:$true] %s2153
          %2159 = dma.vmem_to_hbm [thread:$0]  %s2154, 2048, %s2152, %s2140, 128, 128, 8
        $region32: #{tpu_custom_call.1} parent=27 // pred_fallthru
          _
      $region28: #{tpu_custom_call.1} parent=5 // pred_fallthru
        _
      %p2160 = scmp.le.s32.totalorder 2, %s11
      // Predicated region
      $region33: #{tpu_custom_call.1} parent=5 // pred_check
        %p2161 = pneg %p2160
      $region34: #{tpu_custom_call.1} parent=5 // pred_check_branch
        %2163 = sbr.rel (%p2161) target = $region36
      $region35: #{tpu_custom_call.1} parent=5 // pred_region
        %s2164 = ssub.s32 %s11, 2
        // Predicated region
        $region37: #{tpu_custom_call.1} parent=35 // pred_check
          %p2165 = pneg %p87
        $region38: #{tpu_custom_call.1} parent=35 // pred_check_branch
          %2167 = sbr.rel (%p2165) target = $region40
        $region39: #{tpu_custom_call.1} parent=35 // pred_region
          %s2168 = sand.u32 %s72, 1
          %s2169 = scalar_lea.sflag [#allocation3], %s2168
          %s2170 = sand.u32 %s72, 1
          %s2171 = smul.addr %s2170, 128
          %s2172 = scalar_lea.vmem [#allocation2], %s2171
          %2173 = dma.done %s2169, 2048
        $region40: #{tpu_custom_call.1} parent=35 // pred_fallthru
          _
      $region36: #{tpu_custom_call.1} parent=5 // pred_fallthru
        _
    $region6: #{tpu_custom_call.1} parent=1 // loop_footer
      %s15 = sadd.s32 1, %s11
    $region7: #{tpu_custom_call.1} parent=1 // loop_footer_branch
      %10 = sbr.rel target = $region3
    $region8: #{tpu_custom_call.1} parent=1 // loop_exit
      _
    %2174 = vsyncpa [#allocation3], 1
    %s2175 = scalar_lea.sflag [#allocation3], 1
    %2176 = vsyncpa %s2175, 1

</llo_original>
